<compile_context>
chip_gen: v5e
topology: v5e:2x2
jax: 0.10.0
libtpu: 0.0.40
codegen_flags: <defaults>
</compile_context>

<pallas_src>
import functools

import jax
import jax.numpy as jnp
from jax.experimental import pallas as pl
from jax.experimental.pallas import tpu as pltpu


def _pointnet_cls2_kernel(gf_ref, w1_ref, b1_ref, w2_ref, b2_ref,
                          w3_ref, bias3_ref, out_ref):
    # fc1 (BN folded into w1/b1) -> relu
    x = gf_ref[...]                                                     # [TB, 1024] bf16
    h1 = jnp.dot(x, w1_ref[...], preferred_element_type=jnp.float32)    # [TB, 512] f32
    h1 = jnp.maximum(h1 + b1_ref[...], 0.0).astype(jnp.bfloat16)

    # fc2 -> dropout (identity in eval) -> (BN folded) -> relu
    h2 = jnp.dot(h1, w2_ref[...], preferred_element_type=jnp.float32)   # [TB, 256] f32
    h2 = jnp.maximum(h2 + b2_ref[...], 0.0).astype(jnp.bfloat16)

    # fc3 (with bias), output lane-padded to a multiple of 128
    out = jnp.dot(h2, w3_ref[...], preferred_element_type=jnp.float32)  # [TB, OCHP] f32
    out_ref[...] = (out + bias3_ref[...]).astype(out_ref.dtype)


def _round_up(n, m):
    return -(-n // m) * m


def fold_params(params, eps=1e-5):
    """One-time weight preparation (call OUTSIDE the per-step hot path).

    Folds eval-mode BatchNorm into fc1/fc2 weights plus per-channel biases, casts
    weights/activations' weight side to bf16 (MXU-native, halves weight DMA), and
    zero-pads the fc3 output dimension to a multiple of 128 lanes so the kernel's
    output block is lane-dense.
    """
    s1 = params["bn1_gamma"] / jnp.sqrt(params["bn1_var"] + eps)
    b1 = (params["bn1_beta"] - params["bn1_mean"] * s1).reshape(1, -1).astype(jnp.float32)
    s2 = params["bn2_gamma"] / jnp.sqrt(params["bn2_var"] + eps)
    b2 = (params["bn2_beta"] - params["bn2_mean"] * s2).reshape(1, -1).astype(jnp.float32)

    w1 = (params["fc1_w"] * s1[None, :]).astype(jnp.bfloat16)           # [1024, 512]
    w2 = (params["fc2_w"] * s2[None, :]).astype(jnp.bfloat16)           # [512, 256]

    och = params["fc3_w"].shape[1]
    och_p = _round_up(max(och, 128), 128)
    w3 = jnp.zeros((params["fc3_w"].shape[0], och_p), jnp.bfloat16)
    w3 = w3.at[:, :och].set(params["fc3_w"].astype(jnp.bfloat16))       # [256, OCHP]
    bias3 = jnp.zeros((1, och_p), jnp.float32)
    bias3 = bias3.at[:, :och].set(params["fc3_b"].astype(jnp.float32))  # [1, OCHP]

    folded = {"w1": w1, "b1": b1, "w2": w2, "b2": b2, "w3": w3, "bias3": bias3}
    return folded, och


def _pick_tb(B):
    """Per-generation batch-tile choice (rows).  B is static at trace time."""
    if B <= 256:
        # Latency path: single tile, rounded to the bf16 sublane pack (16, 128).
        return max(16, _round_up(B, 16))
    device_kind = jax.devices()[0].device_kind.lower()
    is_v5 = "v5" in device_kind
    if is_v5 or B < 1024:
        # v5e: M=128 already fills the 4x128^2 MXU, 256 just amortizes step overhead.
        # v6e/v7x mid-size B: 256 keeps >= 2 grid steps for v7x's two TensorCores.
        return 256
    # v6e/v7x, large B: 512-row tiles amortize the ~0.35us/step overhead and fill
    # the M side of the 2x256^2 MXU; padded_B >= 1024 so the grid still has >= 2
    # steps for the two v7x TensorCores.
    return 512


def pointnet_cls2_forward(inst_feat, global_feat, folded, *, och, training=False):
    """Fused fc1/bn1/relu -> fc2/bn2/relu -> fc3 pipeline on TPU.

    `folded` must come from fold_params(); `och` is the true (unpadded) number of
    output classes.
    """
    del inst_feat  # unused by the reference forward
    if training:
        raise NotImplementedError("training-mode dropout (p=0.3) is not implemented")

    B, ICH = global_feat.shape
    w1, b1 = folded["w1"], folded["b1"]
    w2, b2 = folded["w2"], folded["b2"]
    w3, bias3 = folded["w3"], folded["bias3"]
    H1, H2 = w1.shape[1], w2.shape[1]
    och_p = w3.shape[1]

    # Batch tiling: stream activation tiles over a grid axis while the weight
    # BlockSpecs return a constant block index, so weights stay VMEM-resident.
    TB = _pick_tb(B)
    padded_B = _round_up(B, TB)
    gf = global_feat.astype(jnp.bfloat16)
    if padded_B != B:
        # Padded rows compute garbage (relu of folded bias propagates); they are
        # sliced off below and never reduced over, so this is harmless.
        gf = jnp.pad(gf, ((0, padded_B - B), (0, 0)))
    grid = (padded_B // TB,)

    cost = pl.CostEstimate(
        flops=2 * padded_B * (ICH * H1 + H1 * H2 + H2 * och_p),
        transcendentals=0,
        bytes_accessed=(w1.size + w2.size + w3.size + gf.size) * 2
        + (b1.size + b2.size + bias3.size) * 4
        + padded_B * och_p * 4,
    )

    out = pl.pallas_call(
        _pointnet_cls2_kernel,
        out_shape=jax.ShapeDtypeStruct((padded_B, och_p), jnp.float32),
        grid=grid,
        in_specs=[
            pl.BlockSpec((TB, ICH), lambda i: (i, 0)),   # activation tile streams
            pl.BlockSpec((ICH, H1), lambda i: (0, 0)),   # weights: constant block idx
            pl.BlockSpec((1, H1), lambda i: (0, 0)),
            pl.BlockSpec((H1, H2), lambda i: (0, 0)),
            pl.BlockSpec((1, H2), lambda i: (0, 0)),
            pl.BlockSpec((H2, och_p), lambda i: (0, 0)),
            pl.BlockSpec((1, och_p), lambda i: (0, 0)),
        ],
        out_specs=pl.BlockSpec((TB, och_p), lambda i: (i, 0)),  # lane-dense output
        compiler_params=pltpu.CompilerParams(
            dimension_semantics=("parallel",),  # batch tiles are independent (v7x 2 TCs)
            vmem_limit_bytes=32 << 20,
        ),
        cost_estimate=cost,
    )(gf, w1, b1, w2, b2, w3, bias3)
    return out[:B, :och]


def init_params(key, ich=1024, och=2):
    ks = jax.random.split(key, 13)
    p = {}
    # Linear weights stored as [in, out] (transpose of PyTorch's [out, in]).
    p["fc1_w"] = 0.02 * jax.random.normal(ks[0], (ich, 512), jnp.float32)
    p["fc2_w"] = 0.02 * jax.random.normal(ks[1], (512, 256), jnp.float32)
    p["fc3_w"] = 0.02 * jax.random.normal(ks[2], (256, och), jnp.float32)
    p["fc3_b"] = 0.01 * jax.random.normal(ks[3], (och,), jnp.float32)
    # BatchNorm1d(512) and BatchNorm1d(256) — eval-mode buffers / affine params.
    p["bn1_gamma"] = 1.0 + 0.1 * jax.random.normal(ks[4], (512,), jnp.float32)
    p["bn1_beta"] = 0.05 * jax.random.normal(ks[5], (512,), jnp.float32)
    p["bn1_mean"] = 0.1 * jax.random.normal(ks[6], (512,), jnp.float32)
    p["bn1_var"] = jnp.abs(1.0 + 0.1 * jax.random.normal(ks[7], (512,), jnp.float32))
    p["bn2_gamma"] = 1.0 + 0.1 * jax.random.normal(ks[8], (256,), jnp.float32)
    p["bn2_beta"] = 0.05 * jax.random.normal(ks[9], (256,), jnp.float32)
    p["bn2_mean"] = 0.1 * jax.random.normal(ks[10], (256,), jnp.float32)
    p["bn2_var"] = jnp.abs(1.0 + 0.1 * jax.random.normal(ks[11], (256,), jnp.float32))
    return p


def reference_forward(inst_feat, global_feat, params):
    """Pure-JAX f32 reference of the PyTorch forward (eval mode)."""
    del inst_feat
    eps = 1e-5
    x = global_feat @ params["fc1_w"]
    x = (x - params["bn1_mean"]) / jnp.sqrt(params["bn1_var"] + eps)
    x = jnp.maximum(params["bn1_gamma"] * x + params["bn1_beta"], 0.0)
    x = x @ params["fc2_w"]
    x = (x - params["bn2_mean"]) / jnp.sqrt(params["bn2_var"] + eps)
    x = jnp.maximum(params["bn2_gamma"] * x + params["bn2_beta"], 0.0)
    return x @ params["fc3_w"] + params["fc3_b"]


if __name__ == "__main__":
    key = jax.random.PRNGKey(0)
    k_in, k_gf, k_p = jax.random.split(key, 3)

    B, N, ICH, OCH = 2, 8, 1024, 2   # fc1 requires global_feat channel dim = 1024
    # inst_feat: [B, och_inst=64, N] — present for signature parity, unused.
    inst_feat = jax.random.normal(k_in, (B, 64, N), jnp.float32)
    global_feat = jax.random.normal(k_gf, (B, ICH), jnp.float32)
    params = init_params(k_p, ich=ICH, och=OCH)

    # One-time weight preparation (BN fold + bf16 cast + lane padding), outside jit.
    folded, och = fold_params(params)
    folded = jax.tree_util.tree_map(jax.block_until_ready, folded)

    fwd = jax.jit(functools.partial(pointnet_cls2_forward, och=och))
    out = fwd(inst_feat, global_feat, folded)
    out = jax.block_until_ready(out)

    ref = reference_forward(inst_feat, global_feat, params)
    assert out.shape == (B, OCH), out.shape
    # Tolerance loosened vs. a pure-f32 kernel because weights/activations are bf16.
    assert jnp.allclose(out, ref, atol=2e-2, rtol=2e-2), (out, ref)
    print("KERNEL_OK")
</pallas_src>

<mosaic_0001>
module attributes {stable_mosaic.version = 11 : i64} {
  func.func @_pointnet_cls2_kernel(%arg0: i32, %arg1: memref<16x1024xbf16, #tpu.memory_space<vmem>>, %arg2: memref<1024x512xbf16, #tpu.memory_space<vmem>>, %arg3: memref<1x512xf32, #tpu.memory_space<vmem>>, %arg4: memref<512x256xbf16, #tpu.memory_space<vmem>>, %arg5: memref<1x256xf32, #tpu.memory_space<vmem>>, %arg6: memref<256x128xbf16, #tpu.memory_space<vmem>>, %arg7: memref<1x128xf32, #tpu.memory_space<vmem>>, %arg8: memref<16x128xf32, #tpu.memory_space<vmem>>) attributes {dimension_semantics = [#tpu.dimension_semantics<parallel>], iteration_bounds = array<i64: 1>, scalar_prefetch = 0 : i64, scratch_operands = 0 : i64, tpu.core_type = #tpu.core_type<tc>, window_params = [{transform_indices = @transform_0, window_bounds = array<i64: 16, 1024>}, {pipeline_mode = #tpu.pipeline_mode<synchronous>, transform_indices = @transform_1, window_bounds = array<i64: 1024, 512>}, {pipeline_mode = #tpu.pipeline_mode<synchronous>, transform_indices = @transform_2, window_bounds = array<i64: 1, 512>}, {pipeline_mode = #tpu.pipeline_mode<synchronous>, transform_indices = @transform_3, window_bounds = array<i64: 512, 256>}, {pipeline_mode = #tpu.pipeline_mode<synchronous>, transform_indices = @transform_4, window_bounds = array<i64: 1, 256>}, {pipeline_mode = #tpu.pipeline_mode<synchronous>, transform_indices = @transform_5, window_bounds = array<i64: 256, 128>}, {pipeline_mode = #tpu.pipeline_mode<synchronous>, transform_indices = @transform_6, window_bounds = array<i64: 1, 128>}, {transform_indices = @transform_7, window_bounds = array<i64: 16, 128>}]} {
    %c0 = arith.constant 0 : index
    %c0_0 = arith.constant 0 : index
    %0 = vector.load %arg1[%c0, %c0_0] : memref<16x1024xbf16, #tpu.memory_space<vmem>>, vector<16x1024xbf16>
    %c0_1 = arith.constant 0 : index
    %c0_2 = arith.constant 0 : index
    %1 = vector.load %arg2[%c0_1, %c0_2] : memref<1024x512xbf16, #tpu.memory_space<vmem>>, vector<1024x512xbf16>
    %cst = arith.constant dense<0.000000e+00> : vector<16x512xf32>
    %2 = tpu.matmul %0, %1, %cst {dimension_numbers = #tpu.dot_dimension_numbers<[1], [0], [0], [1], [0, 0, 1, 1], [], []>} : vector<16x1024xbf16>, vector<1024x512xbf16>, vector<16x512xf32> -> vector<16x512xf32>
    %c0_3 = arith.constant 0 : index
    %c0_4 = arith.constant 0 : index
    %3 = vector.load %arg3[%c0_3, %c0_4] : memref<1x512xf32, #tpu.memory_space<vmem>>, vector<1x512xf32>
    %4 = vector.broadcast %3 : vector<1x512xf32> to vector<16x512xf32>
    %5 = arith.addf %2, %4 : vector<16x512xf32>
    %cst_5 = arith.constant 0.000000e+00 : f32
    %6 = vector.broadcast %cst_5 : f32 to vector<16x512xf32>
    %7 = arith.maximumf %5, %6 : vector<16x512xf32>
    %8 = arith.truncf %7 : vector<16x512xf32> to vector<16x512xbf16>
    %c0_6 = arith.constant 0 : index
    %c0_7 = arith.constant 0 : index
    %9 = vector.load %arg4[%c0_6, %c0_7] : memref<512x256xbf16, #tpu.memory_space<vmem>>, vector<512x256xbf16>
    %cst_8 = arith.constant dense<0.000000e+00> : vector<16x256xf32>
    %10 = tpu.matmul %8, %9, %cst_8 {dimension_numbers = #tpu.dot_dimension_numbers<[1], [0], [0], [1], [0, 0, 1, 1], [], []>} : vector<16x512xbf16>, vector<512x256xbf16>, vector<16x256xf32> -> vector<16x256xf32>
    %c0_9 = arith.constant 0 : index
    %c0_10 = arith.constant 0 : index
    %11 = vector.load %arg5[%c0_9, %c0_10] : memref<1x256xf32, #tpu.memory_space<vmem>>, vector<1x256xf32>
    %12 = vector.broadcast %11 : vector<1x256xf32> to vector<16x256xf32>
    %13 = arith.addf %10, %12 : vector<16x256xf32>
    %cst_11 = arith.constant 0.000000e+00 : f32
    %14 = vector.broadcast %cst_11 : f32 to vector<16x256xf32>
    %15 = arith.maximumf %13, %14 : vector<16x256xf32>
    %16 = arith.truncf %15 : vector<16x256xf32> to vector<16x256xbf16>
    %c0_12 = arith.constant 0 : index
    %c0_13 = arith.constant 0 : index
    %17 = vector.load %arg6[%c0_12, %c0_13] : memref<256x128xbf16, #tpu.memory_space<vmem>>, vector<256x128xbf16>
    %cst_14 = arith.constant dense<0.000000e+00> : vector<16x128xf32>
    %18 = tpu.matmul %16, %17, %cst_14 {dimension_numbers = #tpu.dot_dimension_numbers<[1], [0], [0], [1], [0, 0, 1, 1], [], []>} : vector<16x256xbf16>, vector<256x128xbf16>, vector<16x128xf32> -> vector<16x128xf32>
    %c0_15 = arith.constant 0 : index
    %c0_16 = arith.constant 0 : index
    %19 = vector.load %arg7[%c0_15, %c0_16] : memref<1x128xf32, #tpu.memory_space<vmem>>, vector<1x128xf32>
    %20 = vector.broadcast %19 : vector<1x128xf32> to vector<16x128xf32>
    %21 = arith.addf %18, %20 : vector<16x128xf32>
    %c0_17 = arith.constant 0 : index
    %c0_18 = arith.constant 0 : index
    %22 = vector.load %arg8[%c0_17, %c0_18] : memref<16x128xf32, #tpu.memory_space<vmem>>, vector<16x128xf32>
    tpu.vector_store %arg8[%c0_17, %c0_18], %21 {strides = array<i32>} : memref<16x128xf32, #tpu.memory_space<vmem>>, vector<16x128xf32>,
    return
  }
  func.func @transform_0(%arg0: i32) -> (i32, i32) {
    %c0_i32 = arith.constant 0 : i32
    %c0_i32_0 = arith.constant 0 : i32
    return %arg0, %c0_i32 : i32, i32
  }
  func.func @transform_1(%arg0: i32) -> (i32, i32) {
    %c0_i32 = arith.constant 0 : i32
    %c0_i32_0 = arith.constant 0 : i32
    %c0_i32_1 = arith.constant 0 : i32
    return %c0_i32, %c0_i32_0 : i32, i32
  }
  func.func @transform_2(%arg0: i32) -> (i32, i32) {
    %c0_i32 = arith.constant 0 : i32
    %c0_i32_0 = arith.constant 0 : i32
    %c0_i32_1 = arith.constant 0 : i32
    return %c0_i32, %c0_i32_0 : i32, i32
  }
  func.func @transform_3(%arg0: i32) -> (i32, i32) {
    %c0_i32 = arith.constant 0 : i32
    %c0_i32_0 = arith.constant 0 : i32
    %c0_i32_1 = arith.constant 0 : i32
    return %c0_i32, %c0_i32_0 : i32, i32
  }
  func.func @transform_4(%arg0: i32) -> (i32, i32) {
    %c0_i32 = arith.constant 0 : i32
    %c0_i32_0 = arith.constant 0 : i32
    %c0_i32_1 = arith.constant 0 : i32
    return %c0_i32, %c0_i32_0 : i32, i32
  }
  func.func @transform_5(%arg0: i32) -> (i32, i32) {
    %c0_i32 = arith.constant 0 : i32
    %c0_i32_0 = arith.constant 0 : i32
    %c0_i32_1 = arith.constant 0 : i32
    return %c0_i32, %c0_i32_0 : i32, i32
  }
  func.func @transform_6(%arg0: i32) -> (i32, i32) {
    %c0_i32 = arith.constant 0 : i32
    %c0_i32_0 = arith.constant 0 : i32
    %c0_i32_1 = arith.constant 0 : i32
    return %c0_i32, %c0_i32_0 : i32, i32
  }
  func.func @transform_7(%arg0: i32) -> (i32, i32) {
    %c0_i32 = arith.constant 0 : i32
    %c0_i32_0 = arith.constant 0 : i32
    return %arg0, %c0_i32 : i32, i32
  }
}

</mosaic_0001>

<llo_original>
// kernel: pointnet_cls2_forward.1
$region0: #{pointnet_cls2_forward.1}
  #allocation0 [shape = 'u32[]', space=smem, size = 0x4, offset = 0x4, fixed_abs, tag = 'smem constant byte address 0x4 - core index']
  #allocation1 [shape = 'u32[72,128]{1,0:T(1,128)}', space=vmem, size = 0x9000, scoped, tag = 'internal scratch']
  %s0 = inlined_call_operand.vmem [shape: bf16[16,1024], index: 0, kind: input, shape index: {}]
  %s1 = inlined_call_operand.hbm [shape: bf16[1024,512], index: 1, kind: input, shape index: {}]
  %s2 = inlined_call_operand.vmem [shape: f32[1,512], index: 2, kind: input, shape index: {}]
  %s3 = inlined_call_operand.hbm [shape: bf16[512,256], index: 3, kind: input, shape index: {}]
  %s4 = inlined_call_operand.vmem [shape: f32[1,256], index: 4, kind: input, shape index: {}]
  %s5 = inlined_call_operand.hbm [shape: bf16[256,128], index: 5, kind: input, shape index: {}]
  %s6 = inlined_call_operand.vmem [shape: f32[1,128], index: 6, kind: input, shape index: {}]
  %s7 = inlined_call_operand.vmem [shape: f32[16,128], index: 7, kind: output, shape index: {}]
  %s8 = sld [smem:[#allocation0]]
  $region50: #{pointnet_cls2_forward.1} parent=0
    _
  %s10 = ssub.s32 1, %s8
  %s11 = scalar_select 0, %s10, %s8
  $region1: #{pointnet_cls2_forward.1} parent=0
    #allocation2 [shape = 'u8[1048576]{0}', space=vmem, size = 0x100000, scoped, tag = 'input window, operand 1, single buffered']
    #allocation3 [shape = 's32[1]{0}', space=sflag, size = 0x4, scoped, tag = 'scoped memory for pointnet_cls2_forward.1']
    #allocation4 [shape = 'u8[262144]{0}', space=vmem, size = 0x40000, scoped, tag = 'input window, operand 3, single buffered']
    #allocation5 [shape = 's32[1]{0}', space=sflag, size = 0x4, scoped, tag = 'scoped memory for pointnet_cls2_forward.1']
    #allocation6 [shape = 'u8[65536]{0}', space=vmem, size = 0x10000, scoped, tag = 'input window, operand 5, single buffered']
    %12 = vsyncpa [#allocation3], 0
    %13 = vsyncpa [#allocation5], 0
    // Predicated region
    $region2: #{pointnet_cls2_forward.1} parent=1 // pred_check
      _
    $region3: #{pointnet_cls2_forward.1} parent=1 // pred_check_branch
      %15 = sbr.rel (0) target = $region5
    $region4: #{pointnet_cls2_forward.1} parent=1 // pred_region
      _
    $region5: #{pointnet_cls2_forward.1} parent=1 // pred_fallthru
      _
    // Predicated region
    $region6: #{pointnet_cls2_forward.1} parent=1 // pred_check
      _
    $region7: #{pointnet_cls2_forward.1} parent=1 // pred_check_branch
      %17 = sbr.rel (0) target = $region9
    $region8: #{pointnet_cls2_forward.1} parent=1 // pred_region
      %19 = vsyncadd [#allocation3], 0
      %s20 = sshll.u32 %s1, 4
      %s21 = int_to_ptr.hbm [resolvable:$true] %s20
      %s22 = sshll.u32 [#allocation2], 4
      %s23 = int_to_ptr.vmem [resolvable:$true] %s22
      %28 = dma.hbm_to_vmem [thread:$0]  %s21, 32768, %s23, [#allocation3], 256, 256, 16
    $region9: #{pointnet_cls2_forward.1} parent=1 // pred_fallthru
      _
    // Predicated region
    $region10: #{pointnet_cls2_forward.1} parent=1 // pred_check
      _
    $region11: #{pointnet_cls2_forward.1} parent=1 // pred_check_branch
      %30 = sbr.rel (0) target = $region13
    $region12: #{pointnet_cls2_forward.1} parent=1 // pred_region
      _
    $region13: #{pointnet_cls2_forward.1} parent=1 // pred_fallthru
      _
    // Predicated region
    $region14: #{pointnet_cls2_forward.1} parent=1 // pred_check
      _
    $region15: #{pointnet_cls2_forward.1} parent=1 // pred_check_branch
      %32 = sbr.rel (0) target = $region17
    $region16: #{pointnet_cls2_forward.1} parent=1 // pred_region
      %34 = vsyncadd [#allocation5], 0
      %s35 = sshll.u32 %s3, 4
      %s36 = int_to_ptr.hbm [resolvable:$true] %s35
      %s37 = sshll.u32 [#allocation4], 4
      %s38 = int_to_ptr.vmem [resolvable:$true] %s37
      %43 = dma.hbm_to_vmem [thread:$0]  %s36, 8192, %s38, [#allocation5], 128, 128, 8
    $region17: #{pointnet_cls2_forward.1} parent=1 // pred_fallthru
      _
    // Predicated region
    $region18: #{pointnet_cls2_forward.1} parent=1 // pred_check
      _
    $region19: #{pointnet_cls2_forward.1} parent=1 // pred_check_branch
      %45 = sbr.rel (0) target = $region21
    $region20: #{pointnet_cls2_forward.1} parent=1 // pred_region
      _
    $region21: #{pointnet_cls2_forward.1} parent=1 // pred_fallthru
      _
    // Predicated region
    $region22: #{pointnet_cls2_forward.1} parent=1 // pred_check
      _
    $region23: #{pointnet_cls2_forward.1} parent=1 // pred_check_branch
      %47 = sbr.rel (0) target = $region25
    $region24: #{pointnet_cls2_forward.1} parent=1 // pred_region
      %49 = vsyncadd [#allocation5], 0
      %s50 = sshll.u32 %s5, 4
      %s51 = int_to_ptr.hbm [resolvable:$true] %s50
      %s52 = sshll.u32 [#allocation6], 4
      %s53 = int_to_ptr.vmem [resolvable:$true] %s52
      %58 = dma.hbm_to_vmem [thread:$0]  %s51, 2048, %s53, [#allocation5], 64, 64, 4
    $region25: #{pointnet_cls2_forward.1} parent=1 // pred_fallthru
      _
    // Predicated region
    $region26: #{pointnet_cls2_forward.1} parent=1 // pred_check
      _
    $region27: #{pointnet_cls2_forward.1} parent=1 // pred_check_branch
      %60 = sbr.rel (0) target = $region29
    $region28: #{pointnet_cls2_forward.1} parent=1 // pred_region
      _
    $region29: #{pointnet_cls2_forward.1} parent=1 // pred_fallthru
      _
    // Predicated region
    $region30: #{pointnet_cls2_forward.1} parent=1 // pred_check
      _
    $region31: #{pointnet_cls2_forward.1} parent=1 // pred_check_branch
      %62 = sbr.rel (0) target = $region33
    $region32: #{pointnet_cls2_forward.1} parent=1 // pred_region
      %64 = dma.done [#allocation3], 32768
    $region33: #{pointnet_cls2_forward.1} parent=1 // pred_fallthru
      _
    // Predicated region
    $region34: #{pointnet_cls2_forward.1} parent=1 // pred_check
      _
    $region35: #{pointnet_cls2_forward.1} parent=1 // pred_check_branch
      %66 = sbr.rel (0) target = $region37
    $region36: #{pointnet_cls2_forward.1} parent=1 // pred_region
      %68 = dma.done [#allocation5], 8192
    $region37: #{pointnet_cls2_forward.1} parent=1 // pred_fallthru
      _
    // Predicated region
    $region38: #{pointnet_cls2_forward.1} parent=1 // pred_check
      _
    $region39: #{pointnet_cls2_forward.1} parent=1 // pred_check_branch
      %70 = sbr.rel (0) target = $region41
    $region40: #{pointnet_cls2_forward.1} parent=1 // pred_region
      %72 = dma.done [#allocation5], 2048
    $region41: #{pointnet_cls2_forward.1} parent=1 // pred_fallthru
      _
    %v73 = vld [vmem:[%s0] sm:$0xff]
    %v74 = vld [vmem:[%s0 + $0x8] sm:$0xff]
    %v75 = vld [vmem:[%s0 + $0x10] sm:$0xff]
    %v76 = vld [vmem:[%s0 + $0x18] sm:$0xff]
    %v77 = vld [vmem:[%s0 + $0x20] sm:$0xff]
    %v78 = vld [vmem:[%s0 + $0x28] sm:$0xff]
    %v79 = vld [vmem:[%s0 + $0x30] sm:$0xff]
    %v80 = vld [vmem:[%s0 + $0x38] sm:$0xff]
    %v81 = vld [vmem:[#allocation2] sm:$0xff]
    %v82 = vld [vmem:[#allocation2 + $0x8] sm:$0xff]
    %v83 = vld [vmem:[#allocation2 + $0x10] sm:$0xff]
    %v84 = vld [vmem:[#allocation2 + $0x18] sm:$0xff]
    %v85 = vld [vmem:[#allocation2 + $0x20] sm:$0xff]
    %v86 = vld [vmem:[#allocation2 + $0x28] sm:$0xff]
    %v87 = vld [vmem:[#allocation2 + $0x30] sm:$0xff]
    %v88 = vld [vmem:[#allocation2 + $0x38] sm:$0xff]
    %v89 = vld [vmem:[#allocation2 + $0x40] sm:$0xff]
    %v90 = vld [vmem:[#allocation2 + $0x48] sm:$0xff]
    %v91 = vld [vmem:[#allocation2 + $0x50] sm:$0xff]
    %v92 = vld [vmem:[#allocation2 + $0x58] sm:$0xff]
    %v93 = vld [vmem:[#allocation2 + $0x60] sm:$0xff]
    %v94 = vld [vmem:[#allocation2 + $0x68] sm:$0xff]
    %v95 = vld [vmem:[#allocation2 + $0x70] sm:$0xff]
    %v96 = vld [vmem:[#allocation2 + $0x78] sm:$0xff]
    %v97 = vld [vmem:[#allocation2 + $0x80] sm:$0xff]
    %v98 = vld [vmem:[#allocation2 + $0x88] sm:$0xff]
    %v99 = vld [vmem:[#allocation2 + $0x90] sm:$0xff]
    %v100 = vld [vmem:[#allocation2 + $0x98] sm:$0xff]
    %v101 = vld [vmem:[#allocation2 + $0xa0] sm:$0xff]
    %v102 = vld [vmem:[#allocation2 + $0xa8] sm:$0xff]
    %v103 = vld [vmem:[#allocation2 + $0xb0] sm:$0xff]
    %v104 = vld [vmem:[#allocation2 + $0xb8] sm:$0xff]
    %v105 = vld [vmem:[#allocation2 + $0xc0] sm:$0xff]
    %v106 = vld [vmem:[#allocation2 + $0xc8] sm:$0xff]
    %v107 = vld [vmem:[#allocation2 + $0xd0] sm:$0xff]
    %v108 = vld [vmem:[#allocation2 + $0xd8] sm:$0xff]
    %v109 = vld [vmem:[#allocation2 + $0xe0] sm:$0xff]
    %v110 = vld [vmem:[#allocation2 + $0xe8] sm:$0xff]
    %v111 = vld [vmem:[#allocation2 + $0xf0] sm:$0xff]
    %v112 = vld [vmem:[#allocation2 + $0xf8] sm:$0xff]
    %v113 = vld [vmem:[#allocation2 + $0x100] sm:$0xff]
    %v114 = vld [vmem:[#allocation2 + $0x108] sm:$0xff]
    %v115 = vld [vmem:[#allocation2 + $0x110] sm:$0xff]
    %v116 = vld [vmem:[#allocation2 + $0x118] sm:$0xff]
    %v117 = vld [vmem:[#allocation2 + $0x120] sm:$0xff]
    %v118 = vld [vmem:[#allocation2 + $0x128] sm:$0xff]
    %v119 = vld [vmem:[#allocation2 + $0x130] sm:$0xff]
    %v120 = vld [vmem:[#allocation2 + $0x138] sm:$0xff]
    %v121 = vld [vmem:[#allocation2 + $0x140] sm:$0xff]
    %v122 = vld [vmem:[#allocation2 + $0x148] sm:$0xff]
    %v123 = vld [vmem:[#allocation2 + $0x150] sm:$0xff]
    %v124 = vld [vmem:[#allocation2 + $0x158] sm:$0xff]
    %v125 = vld [vmem:[#allocation2 + $0x160] sm:$0xff]
    %v126 = vld [vmem:[#allocation2 + $0x168] sm:$0xff]
    %v127 = vld [vmem:[#allocation2 + $0x170] sm:$0xff]
    %v128 = vld [vmem:[#allocation2 + $0x178] sm:$0xff]
    %v129 = vld [vmem:[#allocation2 + $0x180] sm:$0xff]
    %v130 = vld [vmem:[#allocation2 + $0x188] sm:$0xff]
    %v131 = vld [vmem:[#allocation2 + $0x190] sm:$0xff]
    %v132 = vld [vmem:[#allocation2 + $0x198] sm:$0xff]
    %v133 = vld [vmem:[#allocation2 + $0x1a0] sm:$0xff]
    %v134 = vld [vmem:[#allocation2 + $0x1a8] sm:$0xff]
    %v135 = vld [vmem:[#allocation2 + $0x1b0] sm:$0xff]
    %v136 = vld [vmem:[#allocation2 + $0x1b8] sm:$0xff]
    %v137 = vld [vmem:[#allocation2 + $0x1c0] sm:$0xff]
    %v138 = vld [vmem:[#allocation2 + $0x1c8] sm:$0xff]
    %v139 = vld [vmem:[#allocation2 + $0x1d0] sm:$0xff]
    %v140 = vld [vmem:[#allocation2 + $0x1d8] sm:$0xff]
    %v141 = vld [vmem:[#allocation2 + $0x1e0] sm:$0xff]
    %v142 = vld [vmem:[#allocation2 + $0x1e8] sm:$0xff]
    %v143 = vld [vmem:[#allocation2 + $0x1f0] sm:$0xff]
    %v144 = vld [vmem:[#allocation2 + $0x1f8] sm:$0xff]
    %v145 = vld [vmem:[#allocation2 + $0x200] sm:$0xff]
    %v146 = vld [vmem:[#allocation2 + $0x208] sm:$0xff]
    %v147 = vld [vmem:[#allocation2 + $0x210] sm:$0xff]
    %v148 = vld [vmem:[#allocation2 + $0x218] sm:$0xff]
    %v149 = vld [vmem:[#allocation2 + $0x220] sm:$0xff]
    %v150 = vld [vmem:[#allocation2 + $0x228] sm:$0xff]
    %v151 = vld [vmem:[#allocation2 + $0x230] sm:$0xff]
    %v152 = vld [vmem:[#allocation2 + $0x238] sm:$0xff]
    %v153 = vld [vmem:[#allocation2 + $0x240] sm:$0xff]
    %v154 = vld [vmem:[#allocation2 + $0x248] sm:$0xff]
    %v155 = vld [vmem:[#allocation2 + $0x250] sm:$0xff]
    %v156 = vld [vmem:[#allocation2 + $0x258] sm:$0xff]
    %v157 = vld [vmem:[#allocation2 + $0x260] sm:$0xff]
    %v158 = vld [vmem:[#allocation2 + $0x268] sm:$0xff]
    %v159 = vld [vmem:[#allocation2 + $0x270] sm:$0xff]
    %v160 = vld [vmem:[#allocation2 + $0x278] sm:$0xff]
    %v161 = vld [vmem:[#allocation2 + $0x280] sm:$0xff]
    %v162 = vld [vmem:[#allocation2 + $0x288] sm:$0xff]
    %v163 = vld [vmem:[#allocation2 + $0x290] sm:$0xff]
    %v164 = vld [vmem:[#allocation2 + $0x298] sm:$0xff]
    %v165 = vld [vmem:[#allocation2 + $0x2a0] sm:$0xff]
    %v166 = vld [vmem:[#allocation2 + $0x2a8] sm:$0xff]
    %v167 = vld [vmem:[#allocation2 + $0x2b0] sm:$0xff]
    %v168 = vld [vmem:[#allocation2 + $0x2b8] sm:$0xff]
    %v169 = vld [vmem:[#allocation2 + $0x2c0] sm:$0xff]
    %v170 = vld [vmem:[#allocation2 + $0x2c8] sm:$0xff]
    %v171 = vld [vmem:[#allocation2 + $0x2d0] sm:$0xff]
    %v172 = vld [vmem:[#allocation2 + $0x2d8] sm:$0xff]
    %v173 = vld [vmem:[#allocation2 + $0x2e0] sm:$0xff]
    %v174 = vld [vmem:[#allocation2 + $0x2e8] sm:$0xff]
    %v175 = vld [vmem:[#allocation2 + $0x2f0] sm:$0xff]
    %v176 = vld [vmem:[#allocation2 + $0x2f8] sm:$0xff]
    %v177 = vld [vmem:[#allocation2 + $0x300] sm:$0xff]
    %v178 = vld [vmem:[#allocation2 + $0x308] sm:$0xff]
    %v179 = vld [vmem:[#allocation2 + $0x310] sm:$0xff]
    %v180 = vld [vmem:[#allocation2 + $0x318] sm:$0xff]
    %v181 = vld [vmem:[#allocation2 + $0x320] sm:$0xff]
    %v182 = vld [vmem:[#allocation2 + $0x328] sm:$0xff]
    %v183 = vld [vmem:[#allocation2 + $0x330] sm:$0xff]
    %v184 = vld [vmem:[#allocation2 + $0x338] sm:$0xff]
    %v185 = vld [vmem:[#allocation2 + $0x340] sm:$0xff]
    %v186 = vld [vmem:[#allocation2 + $0x348] sm:$0xff]
    %v187 = vld [vmem:[#allocation2 + $0x350] sm:$0xff]
    %v188 = vld [vmem:[#allocation2 + $0x358] sm:$0xff]
    %v189 = vld [vmem:[#allocation2 + $0x360] sm:$0xff]
    %v190 = vld [vmem:[#allocation2 + $0x368] sm:$0xff]
    %v191 = vld [vmem:[#allocation2 + $0x370] sm:$0xff]
    %v192 = vld [vmem:[#allocation2 + $0x378] sm:$0xff]
    %v193 = vld [vmem:[#allocation2 + $0x380] sm:$0xff]
    %v194 = vld [vmem:[#allocation2 + $0x388] sm:$0xff]
    %v195 = vld [vmem:[#allocation2 + $0x390] sm:$0xff]
    %v196 = vld [vmem:[#allocation2 + $0x398] sm:$0xff]
    %v197 = vld [vmem:[#allocation2 + $0x3a0] sm:$0xff]
    %v198 = vld [vmem:[#allocation2 + $0x3a8] sm:$0xff]
    %v199 = vld [vmem:[#allocation2 + $0x3b0] sm:$0xff]
    %v200 = vld [vmem:[#allocation2 + $0x3b8] sm:$0xff]
    %v201 = vld [vmem:[#allocation2 + $0x3c0] sm:$0xff]
    %v202 = vld [vmem:[#allocation2 + $0x3c8] sm:$0xff]
    %v203 = vld [vmem:[#allocation2 + $0x3d0] sm:$0xff]
    %v204 = vld [vmem:[#allocation2 + $0x3d8] sm:$0xff]
    %v205 = vld [vmem:[#allocation2 + $0x3e0] sm:$0xff]
    %v206 = vld [vmem:[#allocation2 + $0x3e8] sm:$0xff]
    %v207 = vld [vmem:[#allocation2 + $0x3f0] sm:$0xff]
    %v208 = vld [vmem:[#allocation2 + $0x3f8] sm:$0xff]
    %v209 = vld [vmem:[#allocation2 + $0x400] sm:$0xff]
    %v210 = vld [vmem:[#allocation2 + $0x408] sm:$0xff]
    %v211 = vld [vmem:[#allocation2 + $0x410] sm:$0xff]
    %v212 = vld [vmem:[#allocation2 + $0x418] sm:$0xff]
    %v213 = vld [vmem:[#allocation2 + $0x420] sm:$0xff]
    %v214 = vld [vmem:[#allocation2 + $0x428] sm:$0xff]
    %v215 = vld [vmem:[#allocation2 + $0x430] sm:$0xff]
    %v216 = vld [vmem:[#allocation2 + $0x438] sm:$0xff]
    %v217 = vld [vmem:[#allocation2 + $0x440] sm:$0xff]
    %v218 = vld [vmem:[#allocation2 + $0x448] sm:$0xff]
    %v219 = vld [vmem:[#allocation2 + $0x450] sm:$0xff]
    %v220 = vld [vmem:[#allocation2 + $0x458] sm:$0xff]
    %v221 = vld [vmem:[#allocation2 + $0x460] sm:$0xff]
    %v222 = vld [vmem:[#allocation2 + $0x468] sm:$0xff]
    %v223 = vld [vmem:[#allocation2 + $0x470] sm:$0xff]
    %v224 = vld [vmem:[#allocation2 + $0x478] sm:$0xff]
    %v225 = vld [vmem:[#allocation2 + $0x480] sm:$0xff]
    %v226 = vld [vmem:[#allocation2 + $0x488] sm:$0xff]
    %v227 = vld [vmem:[#allocation2 + $0x490] sm:$0xff]
    %v228 = vld [vmem:[#allocation2 + $0x498] sm:$0xff]
    %v229 = vld [vmem:[#allocation2 + $0x4a0] sm:$0xff]
    %v230 = vld [vmem:[#allocation2 + $0x4a8] sm:$0xff]
    %v231 = vld [vmem:[#allocation2 + $0x4b0] sm:$0xff]
    %v232 = vld [vmem:[#allocation2 + $0x4b8] sm:$0xff]
    %v233 = vld [vmem:[#allocation2 + $0x4c0] sm:$0xff]
    %v234 = vld [vmem:[#allocation2 + $0x4c8] sm:$0xff]
    %v235 = vld [vmem:[#allocation2 + $0x4d0] sm:$0xff]
    %v236 = vld [vmem:[#allocation2 + $0x4d8] sm:$0xff]
    %v237 = vld [vmem:[#allocation2 + $0x4e0] sm:$0xff]
    %v238 = vld [vmem:[#allocation2 + $0x4e8] sm:$0xff]
    %v239 = vld [vmem:[#allocation2 + $0x4f0] sm:$0xff]
    %v240 = vld [vmem:[#allocation2 + $0x4f8] sm:$0xff]
    %v241 = vld [vmem:[#allocation2 + $0x500] sm:$0xff]
    %v242 = vld [vmem:[#allocation2 + $0x508] sm:$0xff]
    %v243 = vld [vmem:[#allocation2 + $0x510] sm:$0xff]
    %v244 = vld [vmem:[#allocation2 + $0x518] sm:$0xff]
    %v245 = vld [vmem:[#allocation2 + $0x520] sm:$0xff]
    %v246 = vld [vmem:[#allocation2 + $0x528] sm:$0xff]
    %v247 = vld [vmem:[#allocation2 + $0x530] sm:$0xff]
    %v248 = vld [vmem:[#allocation2 + $0x538] sm:$0xff]
    %v249 = vld [vmem:[#allocation2 + $0x540] sm:$0xff]
    %v250 = vld [vmem:[#allocation2 + $0x548] sm:$0xff]
    %v251 = vld [vmem:[#allocation2 + $0x550] sm:$0xff]
    %v252 = vld [vmem:[#allocation2 + $0x558] sm:$0xff]
    %v253 = vld [vmem:[#allocation2 + $0x560] sm:$0xff]
    %v254 = vld [vmem:[#allocation2 + $0x568] sm:$0xff]
    %v255 = vld [vmem:[#allocation2 + $0x570] sm:$0xff]
    %v256 = vld [vmem:[#allocation2 + $0x578] sm:$0xff]
    %v257 = vld [vmem:[#allocation2 + $0x580] sm:$0xff]
    %v258 = vld [vmem:[#allocation2 + $0x588] sm:$0xff]
    %v259 = vld [vmem:[#allocation2 + $0x590] sm:$0xff]
    %v260 = vld [vmem:[#allocation2 + $0x598] sm:$0xff]
    %v261 = vld [vmem:[#allocation2 + $0x5a0] sm:$0xff]
    %v262 = vld [vmem:[#allocation2 + $0x5a8] sm:$0xff]
    %v263 = vld [vmem:[#allocation2 + $0x5b0] sm:$0xff]
    %v264 = vld [vmem:[#allocation2 + $0x5b8] sm:$0xff]
    %v265 = vld [vmem:[#allocation2 + $0x5c0] sm:$0xff]
    %v266 = vld [vmem:[#allocation2 + $0x5c8] sm:$0xff]
    %v267 = vld [vmem:[#allocation2 + $0x5d0] sm:$0xff]
    %v268 = vld [vmem:[#allocation2 + $0x5d8] sm:$0xff]
    %v269 = vld [vmem:[#allocation2 + $0x5e0] sm:$0xff]
    %v270 = vld [vmem:[#allocation2 + $0x5e8] sm:$0xff]
    %v271 = vld [vmem:[#allocation2 + $0x5f0] sm:$0xff]
    %v272 = vld [vmem:[#allocation2 + $0x5f8] sm:$0xff]
    %v273 = vld [vmem:[#allocation2 + $0x600] sm:$0xff]
    %v274 = vld [vmem:[#allocation2 + $0x608] sm:$0xff]
    %v275 = vld [vmem:[#allocation2 + $0x610] sm:$0xff]
    %v276 = vld [vmem:[#allocation2 + $0x618] sm:$0xff]
    %v277 = vld [vmem:[#allocation2 + $0x620] sm:$0xff]
    %v278 = vld [vmem:[#allocation2 + $0x628] sm:$0xff]
    %v279 = vld [vmem:[#allocation2 + $0x630] sm:$0xff]
    %v280 = vld [vmem:[#allocation2 + $0x638] sm:$0xff]
    %v281 = vld [vmem:[#allocation2 + $0x640] sm:$0xff]
    %v282 = vld [vmem:[#allocation2 + $0x648] sm:$0xff]
    %v283 = vld [vmem:[#allocation2 + $0x650] sm:$0xff]
    %v284 = vld [vmem:[#allocation2 + $0x658] sm:$0xff]
    %v285 = vld [vmem:[#allocation2 + $0x660] sm:$0xff]
    %v286 = vld [vmem:[#allocation2 + $0x668] sm:$0xff]
    %v287 = vld [vmem:[#allocation2 + $0x670] sm:$0xff]
    %v288 = vld [vmem:[#allocation2 + $0x678] sm:$0xff]
    %v289 = vld [vmem:[#allocation2 + $0x680] sm:$0xff]
    %v290 = vld [vmem:[#allocation2 + $0x688] sm:$0xff]
    %v291 = vld [vmem:[#allocation2 + $0x690] sm:$0xff]
    %v292 = vld [vmem:[#allocation2 + $0x698] sm:$0xff]
    %v293 = vld [vmem:[#allocation2 + $0x6a0] sm:$0xff]
    %v294 = vld [vmem:[#allocation2 + $0x6a8] sm:$0xff]
    %v295 = vld [vmem:[#allocation2 + $0x6b0] sm:$0xff]
    %v296 = vld [vmem:[#allocation2 + $0x6b8] sm:$0xff]
    %v297 = vld [vmem:[#allocation2 + $0x6c0] sm:$0xff]
    %v298 = vld [vmem:[#allocation2 + $0x6c8] sm:$0xff]
    %v299 = vld [vmem:[#allocation2 + $0x6d0] sm:$0xff]
    %v300 = vld [vmem:[#allocation2 + $0x6d8] sm:$0xff]
    %v301 = vld [vmem:[#allocation2 + $0x6e0] sm:$0xff]
    %v302 = vld [vmem:[#allocation2 + $0x6e8] sm:$0xff]
    %v303 = vld [vmem:[#allocation2 + $0x6f0] sm:$0xff]
    %v304 = vld [vmem:[#allocation2 + $0x6f8] sm:$0xff]
    %v305 = vld [vmem:[#allocation2 + $0x700] sm:$0xff]
    %v306 = vld [vmem:[#allocation2 + $0x708] sm:$0xff]
    %v307 = vld [vmem:[#allocation2 + $0x710] sm:$0xff]
    %v308 = vld [vmem:[#allocation2 + $0x718] sm:$0xff]
    %v309 = vld [vmem:[#allocation2 + $0x720] sm:$0xff]
    %v310 = vld [vmem:[#allocation2 + $0x728] sm:$0xff]
    %v311 = vld [vmem:[#allocation2 + $0x730] sm:$0xff]
    %v312 = vld [vmem:[#allocation2 + $0x738] sm:$0xff]
    %v313 = vld [vmem:[#allocation2 + $0x740] sm:$0xff]
    %v314 = vld [vmem:[#allocation2 + $0x748] sm:$0xff]
    %v315 = vld [vmem:[#allocation2 + $0x750] sm:$0xff]
    %v316 = vld [vmem:[#allocation2 + $0x758] sm:$0xff]
    %v317 = vld [vmem:[#allocation2 + $0x760] sm:$0xff]
    %v318 = vld [vmem:[#allocation2 + $0x768] sm:$0xff]
    %v319 = vld [vmem:[#allocation2 + $0x770] sm:$0xff]
    %v320 = vld [vmem:[#allocation2 + $0x778] sm:$0xff]
    %v321 = vld [vmem:[#allocation2 + $0x780] sm:$0xff]
    %v322 = vld [vmem:[#allocation2 + $0x788] sm:$0xff]
    %v323 = vld [vmem:[#allocation2 + $0x790] sm:$0xff]
    %v324 = vld [vmem:[#allocation2 + $0x798] sm:$0xff]
    %v325 = vld [vmem:[#allocation2 + $0x7a0] sm:$0xff]
    %v326 = vld [vmem:[#allocation2 + $0x7a8] sm:$0xff]
    %v327 = vld [vmem:[#allocation2 + $0x7b0] sm:$0xff]
    %v328 = vld [vmem:[#allocation2 + $0x7b8] sm:$0xff]
    %v329 = vld [vmem:[#allocation2 + $0x7c0] sm:$0xff]
    %v330 = vld [vmem:[#allocation2 + $0x7c8] sm:$0xff]
    %v331 = vld [vmem:[#allocation2 + $0x7d0] sm:$0xff]
    %v332 = vld [vmem:[#allocation2 + $0x7d8] sm:$0xff]
    %v333 = vld [vmem:[#allocation2 + $0x7e0] sm:$0xff]
    %v334 = vld [vmem:[#allocation2 + $0x7e8] sm:$0xff]
    %v335 = vld [vmem:[#allocation2 + $0x7f0] sm:$0xff]
    %v336 = vld [vmem:[#allocation2 + $0x7f8] sm:$0xff]
    %v337 = vld [vmem:[%s2] sm:$0xf]
    %v339 = vperm.slane %v337, 0
    %v340 = vperm.slane %v337, 1
    %v341 = vperm.slane %v337, 2
    %v342 = vperm.slane %v337, 3
    %v355 = vunpack.c.l.b16 %v73
    %v356 = vunpack.c.h.b16 %v73
    %v357 = vunpack.c.l.b16 %v74
    %v358 = vunpack.c.h.b16 %v74
    %v359 = vunpack.c.l.b16 %v75
    %v360 = vunpack.c.h.b16 %v75
    %v361 = vunpack.c.l.b16 %v76
    %v362 = vunpack.c.h.b16 %v76
    %v363 = vunpack.c.l.b16 %v77
    %v364 = vunpack.c.h.b16 %v77
    %v365 = vunpack.c.l.b16 %v78
    %v366 = vunpack.c.h.b16 %v78
    %v367 = vunpack.c.l.b16 %v79
    %v368 = vunpack.c.h.b16 %v79
    %v369 = vunpack.c.l.b16 %v80
    %v370 = vunpack.c.h.b16 %v80
    %v371 = vpack.c.b16 %v363, %v355
    %v372 = vpack.c.b16 %v364, %v356
    %v373 = vpack.c.b16 %v365, %v357
    %v374 = vpack.c.b16 %v366, %v358
    %v375 = vpack.c.b16 %v367, %v359
    %v376 = vpack.c.b16 %v368, %v360
    %v377 = vpack.c.b16 %v369, %v361
    %v378 = vpack.c.b16 %v370, %v362
    %v643 = vunpack.c.l.b16 %v81
    %v644 = vunpack.c.h.b16 %v81
    %v645 = vunpack.c.l.b16 %v82
    %v646 = vunpack.c.h.b16 %v82
    %v647 = vunpack.c.l.b16 %v83
    %v648 = vunpack.c.h.b16 %v83
    %v649 = vunpack.c.l.b16 %v84
    %v650 = vunpack.c.h.b16 %v84
    %v651 = vunpack.c.l.b16 %v85
    %v652 = vunpack.c.h.b16 %v85
    %v653 = vunpack.c.l.b16 %v86
    %v654 = vunpack.c.h.b16 %v86
    %v655 = vunpack.c.l.b16 %v87
    %v656 = vunpack.c.h.b16 %v87
    %v657 = vunpack.c.l.b16 %v88
    %v658 = vunpack.c.h.b16 %v88
    %v659 = vunpack.c.l.b16 %v89
    %v660 = vunpack.c.h.b16 %v89
    %v661 = vunpack.c.l.b16 %v90
    %v662 = vunpack.c.h.b16 %v90
    %v663 = vunpack.c.l.b16 %v91
    %v664 = vunpack.c.h.b16 %v91
    %v665 = vunpack.c.l.b16 %v92
    %v666 = vunpack.c.h.b16 %v92
    %v667 = vunpack.c.l.b16 %v93
    %v668 = vunpack.c.h.b16 %v93
    %v669 = vunpack.c.l.b16 %v94
    %v670 = vunpack.c.h.b16 %v94
    %v671 = vunpack.c.l.b16 %v95
    %v672 = vunpack.c.h.b16 %v95
    %v673 = vunpack.c.l.b16 %v96
    %v674 = vunpack.c.h.b16 %v96
    %v675 = vunpack.c.l.b16 %v97
    %v676 = vunpack.c.h.b16 %v97
    %v677 = vunpack.c.l.b16 %v98
    %v678 = vunpack.c.h.b16 %v98
    %v679 = vunpack.c.l.b16 %v99
    %v680 = vunpack.c.h.b16 %v99
    %v681 = vunpack.c.l.b16 %v100
    %v682 = vunpack.c.h.b16 %v100
    %v683 = vunpack.c.l.b16 %v101
    %v684 = vunpack.c.h.b16 %v101
    %v685 = vunpack.c.l.b16 %v102
    %v686 = vunpack.c.h.b16 %v102
    %v687 = vunpack.c.l.b16 %v103
    %v688 = vunpack.c.h.b16 %v103
    %v689 = vunpack.c.l.b16 %v104
    %v690 = vunpack.c.h.b16 %v104
    %v691 = vunpack.c.l.b16 %v105
    %v692 = vunpack.c.h.b16 %v105
    %v693 = vunpack.c.l.b16 %v106
    %v694 = vunpack.c.h.b16 %v106
    %v695 = vunpack.c.l.b16 %v107
    %v696 = vunpack.c.h.b16 %v107
    %v697 = vunpack.c.l.b16 %v108
    %v698 = vunpack.c.h.b16 %v108
    %v699 = vunpack.c.l.b16 %v109
    %v700 = vunpack.c.h.b16 %v109
    %v701 = vunpack.c.l.b16 %v110
    %v702 = vunpack.c.h.b16 %v110
    %v703 = vunpack.c.l.b16 %v111
    %v704 = vunpack.c.h.b16 %v111
    %v705 = vunpack.c.l.b16 %v112
    %v706 = vunpack.c.h.b16 %v112
    %v707 = vunpack.c.l.b16 %v113
    %v708 = vunpack.c.h.b16 %v113
    %v709 = vunpack.c.l.b16 %v114
    %v710 = vunpack.c.h.b16 %v114
    %v711 = vunpack.c.l.b16 %v115
    %v712 = vunpack.c.h.b16 %v115
    %v713 = vunpack.c.l.b16 %v116
    %v714 = vunpack.c.h.b16 %v116
    %v715 = vunpack.c.l.b16 %v117
    %v716 = vunpack.c.h.b16 %v117
    %v717 = vunpack.c.l.b16 %v118
    %v718 = vunpack.c.h.b16 %v118
    %v719 = vunpack.c.l.b16 %v119
    %v720 = vunpack.c.h.b16 %v119
    %v721 = vunpack.c.l.b16 %v120
    %v722 = vunpack.c.h.b16 %v120
    %v723 = vunpack.c.l.b16 %v121
    %v724 = vunpack.c.h.b16 %v121
    %v725 = vunpack.c.l.b16 %v122
    %v726 = vunpack.c.h.b16 %v122
    %v727 = vunpack.c.l.b16 %v123
    %v728 = vunpack.c.h.b16 %v123
    %v729 = vunpack.c.l.b16 %v124
    %v730 = vunpack.c.h.b16 %v124
    %v731 = vunpack.c.l.b16 %v125
    %v732 = vunpack.c.h.b16 %v125
    %v733 = vunpack.c.l.b16 %v126
    %v734 = vunpack.c.h.b16 %v126
    %v735 = vunpack.c.l.b16 %v127
    %v736 = vunpack.c.h.b16 %v127
    %v737 = vunpack.c.l.b16 %v128
    %v738 = vunpack.c.h.b16 %v128
    %v739 = vunpack.c.l.b16 %v129
    %v740 = vunpack.c.h.b16 %v129
    %v741 = vunpack.c.l.b16 %v130
    %v742 = vunpack.c.h.b16 %v130
    %v743 = vunpack.c.l.b16 %v131
    %v744 = vunpack.c.h.b16 %v131
    %v745 = vunpack.c.l.b16 %v132
    %v746 = vunpack.c.h.b16 %v132
    %v747 = vunpack.c.l.b16 %v133
    %v748 = vunpack.c.h.b16 %v133
    %v749 = vunpack.c.l.b16 %v134
    %v750 = vunpack.c.h.b16 %v134
    %v751 = vunpack.c.l.b16 %v135
    %v752 = vunpack.c.h.b16 %v135
    %v753 = vunpack.c.l.b16 %v136
    %v754 = vunpack.c.h.b16 %v136
    %v755 = vunpack.c.l.b16 %v137
    %v756 = vunpack.c.h.b16 %v137
    %v757 = vunpack.c.l.b16 %v138
    %v758 = vunpack.c.h.b16 %v138
    %v759 = vunpack.c.l.b16 %v139
    %v760 = vunpack.c.h.b16 %v139
    %v761 = vunpack.c.l.b16 %v140
    %v762 = vunpack.c.h.b16 %v140
    %v763 = vunpack.c.l.b16 %v141
    %v764 = vunpack.c.h.b16 %v141
    %v765 = vunpack.c.l.b16 %v142
    %v766 = vunpack.c.h.b16 %v142
    %v767 = vunpack.c.l.b16 %v143
    %v768 = vunpack.c.h.b16 %v143
    %v769 = vunpack.c.l.b16 %v144
    %v770 = vunpack.c.h.b16 %v144
    %v771 = vunpack.c.l.b16 %v145
    %v772 = vunpack.c.h.b16 %v145
    %v773 = vunpack.c.l.b16 %v146
    %v774 = vunpack.c.h.b16 %v146
    %v775 = vunpack.c.l.b16 %v147
    %v776 = vunpack.c.h.b16 %v147
    %v777 = vunpack.c.l.b16 %v148
    %v778 = vunpack.c.h.b16 %v148
    %v779 = vunpack.c.l.b16 %v149
    %v780 = vunpack.c.h.b16 %v149
    %v781 = vunpack.c.l.b16 %v150
    %v782 = vunpack.c.h.b16 %v150
    %v783 = vunpack.c.l.b16 %v151
    %v784 = vunpack.c.h.b16 %v151
    %v785 = vunpack.c.l.b16 %v152
    %v786 = vunpack.c.h.b16 %v152
    %v787 = vunpack.c.l.b16 %v153
    %v788 = vunpack.c.h.b16 %v153
    %v789 = vunpack.c.l.b16 %v154
    %v790 = vunpack.c.h.b16 %v154
    %v791 = vunpack.c.l.b16 %v155
    %v792 = vunpack.c.h.b16 %v155
    %v793 = vunpack.c.l.b16 %v156
    %v794 = vunpack.c.h.b16 %v156
    %v795 = vunpack.c.l.b16 %v157
    %v796 = vunpack.c.h.b16 %v157
    %v797 = vunpack.c.l.b16 %v158
    %v798 = vunpack.c.h.b16 %v158
    %v799 = vunpack.c.l.b16 %v159
    %v800 = vunpack.c.h.b16 %v159
    %v801 = vunpack.c.l.b16 %v160
    %v802 = vunpack.c.h.b16 %v160
    %v803 = vunpack.c.l.b16 %v161
    %v804 = vunpack.c.h.b16 %v161
    %v805 = vunpack.c.l.b16 %v162
    %v806 = vunpack.c.h.b16 %v162
    %v807 = vunpack.c.l.b16 %v163
    %v808 = vunpack.c.h.b16 %v163
    %v809 = vunpack.c.l.b16 %v164
    %v810 = vunpack.c.h.b16 %v164
    %v811 = vunpack.c.l.b16 %v165
    %v812 = vunpack.c.h.b16 %v165
    %v813 = vunpack.c.l.b16 %v166
    %v814 = vunpack.c.h.b16 %v166
    %v815 = vunpack.c.l.b16 %v167
    %v816 = vunpack.c.h.b16 %v167
    %v817 = vunpack.c.l.b16 %v168
    %v818 = vunpack.c.h.b16 %v168
    %v819 = vunpack.c.l.b16 %v169
    %v820 = vunpack.c.h.b16 %v169
    %v821 = vunpack.c.l.b16 %v170
    %v822 = vunpack.c.h.b16 %v170
    %v823 = vunpack.c.l.b16 %v171
    %v824 = vunpack.c.h.b16 %v171
    %v825 = vunpack.c.l.b16 %v172
    %v826 = vunpack.c.h.b16 %v172
    %v827 = vunpack.c.l.b16 %v173
    %v828 = vunpack.c.h.b16 %v173
    %v829 = vunpack.c.l.b16 %v174
    %v830 = vunpack.c.h.b16 %v174
    %v831 = vunpack.c.l.b16 %v175
    %v832 = vunpack.c.h.b16 %v175
    %v833 = vunpack.c.l.b16 %v176
    %v834 = vunpack.c.h.b16 %v176
    %v835 = vunpack.c.l.b16 %v177
    %v836 = vunpack.c.h.b16 %v177
    %v837 = vunpack.c.l.b16 %v178
    %v838 = vunpack.c.h.b16 %v178
    %v839 = vunpack.c.l.b16 %v179
    %v840 = vunpack.c.h.b16 %v179
    %v841 = vunpack.c.l.b16 %v180
    %v842 = vunpack.c.h.b16 %v180
    %v843 = vunpack.c.l.b16 %v181
    %v844 = vunpack.c.h.b16 %v181
    %v845 = vunpack.c.l.b16 %v182
    %v846 = vunpack.c.h.b16 %v182
    %v847 = vunpack.c.l.b16 %v183
    %v848 = vunpack.c.h.b16 %v183
    %v849 = vunpack.c.l.b16 %v184
    %v850 = vunpack.c.h.b16 %v184
    %v851 = vunpack.c.l.b16 %v185
    %v852 = vunpack.c.h.b16 %v185
    %v853 = vunpack.c.l.b16 %v186
    %v854 = vunpack.c.h.b16 %v186
    %v855 = vunpack.c.l.b16 %v187
    %v856 = vunpack.c.h.b16 %v187
    %v857 = vunpack.c.l.b16 %v188
    %v858 = vunpack.c.h.b16 %v188
    %v859 = vunpack.c.l.b16 %v189
    %v860 = vunpack.c.h.b16 %v189
    %v861 = vunpack.c.l.b16 %v190
    %v862 = vunpack.c.h.b16 %v190
    %v863 = vunpack.c.l.b16 %v191
    %v864 = vunpack.c.h.b16 %v191
    %v865 = vunpack.c.l.b16 %v192
    %v866 = vunpack.c.h.b16 %v192
    %v867 = vunpack.c.l.b16 %v193
    %v868 = vunpack.c.h.b16 %v193
    %v869 = vunpack.c.l.b16 %v194
    %v870 = vunpack.c.h.b16 %v194
    %v871 = vunpack.c.l.b16 %v195
    %v872 = vunpack.c.h.b16 %v195
    %v873 = vunpack.c.l.b16 %v196
    %v874 = vunpack.c.h.b16 %v196
    %v875 = vunpack.c.l.b16 %v197
    %v876 = vunpack.c.h.b16 %v197
    %v877 = vunpack.c.l.b16 %v198
    %v878 = vunpack.c.h.b16 %v198
    %v879 = vunpack.c.l.b16 %v199
    %v880 = vunpack.c.h.b16 %v199
    %v881 = vunpack.c.l.b16 %v200
    %v882 = vunpack.c.h.b16 %v200
    %v883 = vunpack.c.l.b16 %v201
    %v884 = vunpack.c.h.b16 %v201
    %v885 = vunpack.c.l.b16 %v202
    %v886 = vunpack.c.h.b16 %v202
    %v887 = vunpack.c.l.b16 %v203
    %v888 = vunpack.c.h.b16 %v203
    %v889 = vunpack.c.l.b16 %v204
    %v890 = vunpack.c.h.b16 %v204
    %v891 = vunpack.c.l.b16 %v205
    %v892 = vunpack.c.h.b16 %v205
    %v893 = vunpack.c.l.b16 %v206
    %v894 = vunpack.c.h.b16 %v206
    %v895 = vunpack.c.l.b16 %v207
    %v896 = vunpack.c.h.b16 %v207
    %v897 = vunpack.c.l.b16 %v208
    %v898 = vunpack.c.h.b16 %v208
    %v899 = vunpack.c.l.b16 %v209
    %v900 = vunpack.c.h.b16 %v209
    %v901 = vunpack.c.l.b16 %v210
    %v902 = vunpack.c.h.b16 %v210
    %v903 = vunpack.c.l.b16 %v211
    %v904 = vunpack.c.h.b16 %v211
    %v905 = vunpack.c.l.b16 %v212
    %v906 = vunpack.c.h.b16 %v212
    %v907 = vunpack.c.l.b16 %v213
    %v908 = vunpack.c.h.b16 %v213
    %v909 = vunpack.c.l.b16 %v214
    %v910 = vunpack.c.h.b16 %v214
    %v911 = vunpack.c.l.b16 %v215
    %v912 = vunpack.c.h.b16 %v215
    %v913 = vunpack.c.l.b16 %v216
    %v914 = vunpack.c.h.b16 %v216
    %v915 = vunpack.c.l.b16 %v217
    %v916 = vunpack.c.h.b16 %v217
    %v917 = vunpack.c.l.b16 %v218
    %v918 = vunpack.c.h.b16 %v218
    %v919 = vunpack.c.l.b16 %v219
    %v920 = vunpack.c.h.b16 %v219
    %v921 = vunpack.c.l.b16 %v220
    %v922 = vunpack.c.h.b16 %v220
    %v923 = vunpack.c.l.b16 %v221
    %v924 = vunpack.c.h.b16 %v221
    %v925 = vunpack.c.l.b16 %v222
    %v926 = vunpack.c.h.b16 %v222
    %v927 = vunpack.c.l.b16 %v223
    %v928 = vunpack.c.h.b16 %v223
    %v929 = vunpack.c.l.b16 %v224
    %v930 = vunpack.c.h.b16 %v224
    %v931 = vunpack.c.l.b16 %v225
    %v932 = vunpack.c.h.b16 %v225
    %v933 = vunpack.c.l.b16 %v226
    %v934 = vunpack.c.h.b16 %v226
    %v935 = vunpack.c.l.b16 %v227
    %v936 = vunpack.c.h.b16 %v227
    %v937 = vunpack.c.l.b16 %v228
    %v938 = vunpack.c.h.b16 %v228
    %v939 = vunpack.c.l.b16 %v229
    %v940 = vunpack.c.h.b16 %v229
    %v941 = vunpack.c.l.b16 %v230
    %v942 = vunpack.c.h.b16 %v230
    %v943 = vunpack.c.l.b16 %v231
    %v944 = vunpack.c.h.b16 %v231
    %v945 = vunpack.c.l.b16 %v232
    %v946 = vunpack.c.h.b16 %v232
    %v947 = vunpack.c.l.b16 %v233
    %v948 = vunpack.c.h.b16 %v233
    %v949 = vunpack.c.l.b16 %v234
    %v950 = vunpack.c.h.b16 %v234
    %v951 = vunpack.c.l.b16 %v235
    %v952 = vunpack.c.h.b16 %v235
    %v953 = vunpack.c.l.b16 %v236
    %v954 = vunpack.c.h.b16 %v236
    %v955 = vunpack.c.l.b16 %v237
    %v956 = vunpack.c.h.b16 %v237
    %v957 = vunpack.c.l.b16 %v238
    %v958 = vunpack.c.h.b16 %v238
    %v959 = vunpack.c.l.b16 %v239
    %v960 = vunpack.c.h.b16 %v239
    %v961 = vunpack.c.l.b16 %v240
    %v962 = vunpack.c.h.b16 %v240
    %v963 = vunpack.c.l.b16 %v241
    %v964 = vunpack.c.h.b16 %v241
    %v965 = vunpack.c.l.b16 %v242
    %v966 = vunpack.c.h.b16 %v242
    %v967 = vunpack.c.l.b16 %v243
    %v968 = vunpack.c.h.b16 %v243
    %v969 = vunpack.c.l.b16 %v244
    %v970 = vunpack.c.h.b16 %v244
    %v971 = vunpack.c.l.b16 %v245
    %v972 = vunpack.c.h.b16 %v245
    %v973 = vunpack.c.l.b16 %v246
    %v974 = vunpack.c.h.b16 %v246
    %v975 = vunpack.c.l.b16 %v247
    %v976 = vunpack.c.h.b16 %v247
    %v977 = vunpack.c.l.b16 %v248
    %v978 = vunpack.c.h.b16 %v248
    %v979 = vunpack.c.l.b16 %v249
    %v980 = vunpack.c.h.b16 %v249
    %v981 = vunpack.c.l.b16 %v250
    %v982 = vunpack.c.h.b16 %v250
    %v983 = vunpack.c.l.b16 %v251
    %v984 = vunpack.c.h.b16 %v251
    %v985 = vunpack.c.l.b16 %v252
    %v986 = vunpack.c.h.b16 %v252
    %v987 = vunpack.c.l.b16 %v253
    %v988 = vunpack.c.h.b16 %v253
    %v989 = vunpack.c.l.b16 %v254
    %v990 = vunpack.c.h.b16 %v254
    %v991 = vunpack.c.l.b16 %v255
    %v992 = vunpack.c.h.b16 %v255
    %v993 = vunpack.c.l.b16 %v256
    %v994 = vunpack.c.h.b16 %v256
    %v995 = vunpack.c.l.b16 %v257
    %v996 = vunpack.c.h.b16 %v257
    %v997 = vunpack.c.l.b16 %v258
    %v998 = vunpack.c.h.b16 %v258
    %v999 = vunpack.c.l.b16 %v259
    %v1000 = vunpack.c.h.b16 %v259
    %v1001 = vunpack.c.l.b16 %v260
    %v1002 = vunpack.c.h.b16 %v260
    %v1003 = vunpack.c.l.b16 %v261
    %v1004 = vunpack.c.h.b16 %v261
    %v1005 = vunpack.c.l.b16 %v262
    %v1006 = vunpack.c.h.b16 %v262
    %v1007 = vunpack.c.l.b16 %v263
    %v1008 = vunpack.c.h.b16 %v263
    %v1009 = vunpack.c.l.b16 %v264
    %v1010 = vunpack.c.h.b16 %v264
    %v1011 = vunpack.c.l.b16 %v265
    %v1012 = vunpack.c.h.b16 %v265
    %v1013 = vunpack.c.l.b16 %v266
    %v1014 = vunpack.c.h.b16 %v266
    %v1015 = vunpack.c.l.b16 %v267
    %v1016 = vunpack.c.h.b16 %v267
    %v1017 = vunpack.c.l.b16 %v268
    %v1018 = vunpack.c.h.b16 %v268
    %v1019 = vunpack.c.l.b16 %v269
    %v1020 = vunpack.c.h.b16 %v269
    %v1021 = vunpack.c.l.b16 %v270
    %v1022 = vunpack.c.h.b16 %v270
    %v1023 = vunpack.c.l.b16 %v271
    %v1024 = vunpack.c.h.b16 %v271
    %v1025 = vunpack.c.l.b16 %v272
    %v1026 = vunpack.c.h.b16 %v272
    %v1027 = vunpack.c.l.b16 %v273
    %v1028 = vunpack.c.h.b16 %v273
    %v1029 = vunpack.c.l.b16 %v274
    %v1030 = vunpack.c.h.b16 %v274
    %v1031 = vunpack.c.l.b16 %v275
    %v1032 = vunpack.c.h.b16 %v275
    %v1033 = vunpack.c.l.b16 %v276
    %v1034 = vunpack.c.h.b16 %v276
    %v1035 = vunpack.c.l.b16 %v277
    %v1036 = vunpack.c.h.b16 %v277
    %v1037 = vunpack.c.l.b16 %v278
    %v1038 = vunpack.c.h.b16 %v278
    %v1039 = vunpack.c.l.b16 %v279
    %v1040 = vunpack.c.h.b16 %v279
    %v1041 = vunpack.c.l.b16 %v280
    %v1042 = vunpack.c.h.b16 %v280
    %v1043 = vunpack.c.l.b16 %v281
    %v1044 = vunpack.c.h.b16 %v281
    %v1045 = vunpack.c.l.b16 %v282
    %v1046 = vunpack.c.h.b16 %v282
    %v1047 = vunpack.c.l.b16 %v283
    %v1048 = vunpack.c.h.b16 %v283
    %v1049 = vunpack.c.l.b16 %v284
    %v1050 = vunpack.c.h.b16 %v284
    %v1051 = vunpack.c.l.b16 %v285
    %v1052 = vunpack.c.h.b16 %v285
    %v1053 = vunpack.c.l.b16 %v286
    %v1054 = vunpack.c.h.b16 %v286
    %v1055 = vunpack.c.l.b16 %v287
    %v1056 = vunpack.c.h.b16 %v287
    %v1057 = vunpack.c.l.b16 %v288
    %v1058 = vunpack.c.h.b16 %v288
    %v1059 = vunpack.c.l.b16 %v289
    %v1060 = vunpack.c.h.b16 %v289
    %v1061 = vunpack.c.l.b16 %v290
    %v1062 = vunpack.c.h.b16 %v290
    %v1063 = vunpack.c.l.b16 %v291
    %v1064 = vunpack.c.h.b16 %v291
    %v1065 = vunpack.c.l.b16 %v292
    %v1066 = vunpack.c.h.b16 %v292
    %v1067 = vunpack.c.l.b16 %v293
    %v1068 = vunpack.c.h.b16 %v293
    %v1069 = vunpack.c.l.b16 %v294
    %v1070 = vunpack.c.h.b16 %v294
    %v1071 = vunpack.c.l.b16 %v295
    %v1072 = vunpack.c.h.b16 %v295
    %v1073 = vunpack.c.l.b16 %v296
    %v1074 = vunpack.c.h.b16 %v296
    %v1075 = vunpack.c.l.b16 %v297
    %v1076 = vunpack.c.h.b16 %v297
    %v1077 = vunpack.c.l.b16 %v298
    %v1078 = vunpack.c.h.b16 %v298
    %v1079 = vunpack.c.l.b16 %v299
    %v1080 = vunpack.c.h.b16 %v299
    %v1081 = vunpack.c.l.b16 %v300
    %v1082 = vunpack.c.h.b16 %v300
    %v1083 = vunpack.c.l.b16 %v301
    %v1084 = vunpack.c.h.b16 %v301
    %v1085 = vunpack.c.l.b16 %v302
    %v1086 = vunpack.c.h.b16 %v302
    %v1087 = vunpack.c.l.b16 %v303
    %v1088 = vunpack.c.h.b16 %v303
    %v1089 = vunpack.c.l.b16 %v304
    %v1090 = vunpack.c.h.b16 %v304
    %v1091 = vunpack.c.l.b16 %v305
    %v1092 = vunpack.c.h.b16 %v305
    %v1093 = vunpack.c.l.b16 %v306
    %v1094 = vunpack.c.h.b16 %v306
    %v1095 = vunpack.c.l.b16 %v307
    %v1096 = vunpack.c.h.b16 %v307
    %v1097 = vunpack.c.l.b16 %v308
    %v1098 = vunpack.c.h.b16 %v308
    %v1099 = vunpack.c.l.b16 %v309
    %v1100 = vunpack.c.h.b16 %v309
    %v1101 = vunpack.c.l.b16 %v310
    %v1102 = vunpack.c.h.b16 %v310
    %v1103 = vunpack.c.l.b16 %v311
    %v1104 = vunpack.c.h.b16 %v311
    %v1105 = vunpack.c.l.b16 %v312
    %v1106 = vunpack.c.h.b16 %v312
    %v1107 = vunpack.c.l.b16 %v313
    %v1108 = vunpack.c.h.b16 %v313
    %v1109 = vunpack.c.l.b16 %v314
    %v1110 = vunpack.c.h.b16 %v314
    %v1111 = vunpack.c.l.b16 %v315
    %v1112 = vunpack.c.h.b16 %v315
    %v1113 = vunpack.c.l.b16 %v316
    %v1114 = vunpack.c.h.b16 %v316
    %v1115 = vunpack.c.l.b16 %v317
    %v1116 = vunpack.c.h.b16 %v317
    %v1117 = vunpack.c.l.b16 %v318
    %v1118 = vunpack.c.h.b16 %v318
    %v1119 = vunpack.c.l.b16 %v319
    %v1120 = vunpack.c.h.b16 %v319
    %v1121 = vunpack.c.l.b16 %v320
    %v1122 = vunpack.c.h.b16 %v320
    %v1123 = vunpack.c.l.b16 %v321
    %v1124 = vunpack.c.h.b16 %v321
    %v1125 = vunpack.c.l.b16 %v322
    %v1126 = vunpack.c.h.b16 %v322
    %v1127 = vunpack.c.l.b16 %v323
    %v1128 = vunpack.c.h.b16 %v323
    %v1129 = vunpack.c.l.b16 %v324
    %v1130 = vunpack.c.h.b16 %v324
    %v1131 = vunpack.c.l.b16 %v325
    %v1132 = vunpack.c.h.b16 %v325
    %v1133 = vunpack.c.l.b16 %v326
    %v1134 = vunpack.c.h.b16 %v326
    %v1135 = vunpack.c.l.b16 %v327
    %v1136 = vunpack.c.h.b16 %v327
    %v1137 = vunpack.c.l.b16 %v328
    %v1138 = vunpack.c.h.b16 %v328
    %v1139 = vunpack.c.l.b16 %v329
    %v1140 = vunpack.c.h.b16 %v329
    %v1141 = vunpack.c.l.b16 %v330
    %v1142 = vunpack.c.h.b16 %v330
    %v1143 = vunpack.c.l.b16 %v331
    %v1144 = vunpack.c.h.b16 %v331
    %v1145 = vunpack.c.l.b16 %v332
    %v1146 = vunpack.c.h.b16 %v332
    %v1147 = vunpack.c.l.b16 %v333
    %v1148 = vunpack.c.h.b16 %v333
    %v1149 = vunpack.c.l.b16 %v334
    %v1150 = vunpack.c.h.b16 %v334
    %v1151 = vunpack.c.l.b16 %v335
    %v1152 = vunpack.c.h.b16 %v335
    %v1153 = vunpack.c.l.b16 %v336
    %v1154 = vunpack.c.h.b16 %v336
    %v1155 = vpack.c.b16 %v647, %v643
    %v1156 = vpack.c.b16 %v648, %v644
    %v1157 = vpack.c.b16 %v649, %v645
    %v1158 = vpack.c.b16 %v650, %v646
    %v1159 = vpack.c.b16 %v655, %v651
    %v1160 = vpack.c.b16 %v656, %v652
    %v1161 = vpack.c.b16 %v657, %v653
    %v1162 = vpack.c.b16 %v658, %v654
    %v1163 = vpack.c.b16 %v663, %v659
    %v1164 = vpack.c.b16 %v664, %v660
    %v1165 = vpack.c.b16 %v665, %v661
    %v1166 = vpack.c.b16 %v666, %v662
    %v1167 = vpack.c.b16 %v671, %v667
    %v1168 = vpack.c.b16 %v672, %v668
    %v1169 = vpack.c.b16 %v673, %v669
    %v1170 = vpack.c.b16 %v674, %v670
    %v1171 = vpack.c.b16 %v679, %v675
    %v1172 = vpack.c.b16 %v680, %v676
    %v1173 = vpack.c.b16 %v681, %v677
    %v1174 = vpack.c.b16 %v682, %v678
    %v1175 = vpack.c.b16 %v687, %v683
    %v1176 = vpack.c.b16 %v688, %v684
    %v1177 = vpack.c.b16 %v689, %v685
    %v1178 = vpack.c.b16 %v690, %v686
    %v1179 = vpack.c.b16 %v695, %v691
    %v1180 = vpack.c.b16 %v696, %v692
    %v1181 = vpack.c.b16 %v697, %v693
    %v1182 = vpack.c.b16 %v698, %v694
    %v1183 = vpack.c.b16 %v703, %v699
    %v1184 = vpack.c.b16 %v704, %v700
    %v1185 = vpack.c.b16 %v705, %v701
    %v1186 = vpack.c.b16 %v706, %v702
    %v1187 = vpack.c.b16 %v711, %v707
    %v1188 = vpack.c.b16 %v712, %v708
    %v1189 = vpack.c.b16 %v713, %v709
    %v1190 = vpack.c.b16 %v714, %v710
    %v1191 = vpack.c.b16 %v719, %v715
    %v1192 = vpack.c.b16 %v720, %v716
    %v1193 = vpack.c.b16 %v721, %v717
    %v1194 = vpack.c.b16 %v722, %v718
    %v1195 = vpack.c.b16 %v727, %v723
    %v1196 = vpack.c.b16 %v728, %v724
    %v1197 = vpack.c.b16 %v729, %v725
    %v1198 = vpack.c.b16 %v730, %v726
    %v1199 = vpack.c.b16 %v735, %v731
    %v1200 = vpack.c.b16 %v736, %v732
    %v1201 = vpack.c.b16 %v737, %v733
    %v1202 = vpack.c.b16 %v738, %v734
    %v1203 = vpack.c.b16 %v743, %v739
    %v1204 = vpack.c.b16 %v744, %v740
    %v1205 = vpack.c.b16 %v745, %v741
    %v1206 = vpack.c.b16 %v746, %v742
    %v1207 = vpack.c.b16 %v751, %v747
    %v1208 = vpack.c.b16 %v752, %v748
    %v1209 = vpack.c.b16 %v753, %v749
    %v1210 = vpack.c.b16 %v754, %v750
    %v1211 = vpack.c.b16 %v759, %v755
    %v1212 = vpack.c.b16 %v760, %v756
    %v1213 = vpack.c.b16 %v761, %v757
    %v1214 = vpack.c.b16 %v762, %v758
    %v1215 = vpack.c.b16 %v767, %v763
    %v1216 = vpack.c.b16 %v768, %v764
    %v1217 = vpack.c.b16 %v769, %v765
    %v1218 = vpack.c.b16 %v770, %v766
    %v1219 = vpack.c.b16 %v775, %v771
    %v1220 = vpack.c.b16 %v776, %v772
    %v1221 = vpack.c.b16 %v777, %v773
    %v1222 = vpack.c.b16 %v778, %v774
    %v1223 = vpack.c.b16 %v783, %v779
    %v1224 = vpack.c.b16 %v784, %v780
    %v1225 = vpack.c.b16 %v785, %v781
    %v1226 = vpack.c.b16 %v786, %v782
    %v1227 = vpack.c.b16 %v791, %v787
    %v1228 = vpack.c.b16 %v792, %v788
    %v1229 = vpack.c.b16 %v793, %v789
    %v1230 = vpack.c.b16 %v794, %v790
    %v1231 = vpack.c.b16 %v799, %v795
    %v1232 = vpack.c.b16 %v800, %v796
    %v1233 = vpack.c.b16 %v801, %v797
    %v1234 = vpack.c.b16 %v802, %v798
    %v1235 = vpack.c.b16 %v807, %v803
    %v1236 = vpack.c.b16 %v808, %v804
    %v1237 = vpack.c.b16 %v809, %v805
    %v1238 = vpack.c.b16 %v810, %v806
    %v1239 = vpack.c.b16 %v815, %v811
    %v1240 = vpack.c.b16 %v816, %v812
    %v1241 = vpack.c.b16 %v817, %v813
    %v1242 = vpack.c.b16 %v818, %v814
    %v1243 = vpack.c.b16 %v823, %v819
    %v1244 = vpack.c.b16 %v824, %v820
    %v1245 = vpack.c.b16 %v825, %v821
    %v1246 = vpack.c.b16 %v826, %v822
    %v1247 = vpack.c.b16 %v831, %v827
    %v1248 = vpack.c.b16 %v832, %v828
    %v1249 = vpack.c.b16 %v833, %v829
    %v1250 = vpack.c.b16 %v834, %v830
    %v1251 = vpack.c.b16 %v839, %v835
    %v1252 = vpack.c.b16 %v840, %v836
    %v1253 = vpack.c.b16 %v841, %v837
    %v1254 = vpack.c.b16 %v842, %v838
    %v1255 = vpack.c.b16 %v847, %v843
    %v1256 = vpack.c.b16 %v848, %v844
    %v1257 = vpack.c.b16 %v849, %v845
    %v1258 = vpack.c.b16 %v850, %v846
    %v1259 = vpack.c.b16 %v855, %v851
    %v1260 = vpack.c.b16 %v856, %v852
    %v1261 = vpack.c.b16 %v857, %v853
    %v1262 = vpack.c.b16 %v858, %v854
    %v1263 = vpack.c.b16 %v863, %v859
    %v1264 = vpack.c.b16 %v864, %v860
    %v1265 = vpack.c.b16 %v865, %v861
    %v1266 = vpack.c.b16 %v866, %v862
    %v1267 = vpack.c.b16 %v871, %v867
    %v1268 = vpack.c.b16 %v872, %v868
    %v1269 = vpack.c.b16 %v873, %v869
    %v1270 = vpack.c.b16 %v874, %v870
    %v1271 = vpack.c.b16 %v879, %v875
    %v1272 = vpack.c.b16 %v880, %v876
    %v1273 = vpack.c.b16 %v881, %v877
    %v1274 = vpack.c.b16 %v882, %v878
    %v1275 = vpack.c.b16 %v887, %v883
    %v1276 = vpack.c.b16 %v888, %v884
    %v1277 = vpack.c.b16 %v889, %v885
    %v1278 = vpack.c.b16 %v890, %v886
    %v1279 = vpack.c.b16 %v895, %v891
    %v1280 = vpack.c.b16 %v896, %v892
    %v1281 = vpack.c.b16 %v897, %v893
    %v1282 = vpack.c.b16 %v898, %v894
    %v1283 = vpack.c.b16 %v903, %v899
    %v1284 = vpack.c.b16 %v904, %v900
    %v1285 = vpack.c.b16 %v905, %v901
    %v1286 = vpack.c.b16 %v906, %v902
    %v1287 = vpack.c.b16 %v911, %v907
    %v1288 = vpack.c.b16 %v912, %v908
    %v1289 = vpack.c.b16 %v913, %v909
    %v1290 = vpack.c.b16 %v914, %v910
    %v1291 = vpack.c.b16 %v919, %v915
    %v1292 = vpack.c.b16 %v920, %v916
    %v1293 = vpack.c.b16 %v921, %v917
    %v1294 = vpack.c.b16 %v922, %v918
    %v1295 = vpack.c.b16 %v927, %v923
    %v1296 = vpack.c.b16 %v928, %v924
    %v1297 = vpack.c.b16 %v929, %v925
    %v1298 = vpack.c.b16 %v930, %v926
    %v1299 = vpack.c.b16 %v935, %v931
    %v1300 = vpack.c.b16 %v936, %v932
    %v1301 = vpack.c.b16 %v937, %v933
    %v1302 = vpack.c.b16 %v938, %v934
    %v1303 = vpack.c.b16 %v943, %v939
    %v1304 = vpack.c.b16 %v944, %v940
    %v1305 = vpack.c.b16 %v945, %v941
    %v1306 = vpack.c.b16 %v946, %v942
    %v1307 = vpack.c.b16 %v951, %v947
    %v1308 = vpack.c.b16 %v952, %v948
    %v1309 = vpack.c.b16 %v953, %v949
    %v1310 = vpack.c.b16 %v954, %v950
    %v1311 = vpack.c.b16 %v959, %v955
    %v1312 = vpack.c.b16 %v960, %v956
    %v1313 = vpack.c.b16 %v961, %v957
    %v1314 = vpack.c.b16 %v962, %v958
    %v1315 = vpack.c.b16 %v967, %v963
    %v1316 = vpack.c.b16 %v968, %v964
    %v1317 = vpack.c.b16 %v969, %v965
    %v1318 = vpack.c.b16 %v970, %v966
    %v1319 = vpack.c.b16 %v975, %v971
    %v1320 = vpack.c.b16 %v976, %v972
    %v1321 = vpack.c.b16 %v977, %v973
    %v1322 = vpack.c.b16 %v978, %v974
    %v1323 = vpack.c.b16 %v983, %v979
    %v1324 = vpack.c.b16 %v984, %v980
    %v1325 = vpack.c.b16 %v985, %v981
    %v1326 = vpack.c.b16 %v986, %v982
    %v1327 = vpack.c.b16 %v991, %v987
    %v1328 = vpack.c.b16 %v992, %v988
    %v1329 = vpack.c.b16 %v993, %v989
    %v1330 = vpack.c.b16 %v994, %v990
    %v1331 = vpack.c.b16 %v999, %v995
    %v1332 = vpack.c.b16 %v1000, %v996
    %v1333 = vpack.c.b16 %v1001, %v997
    %v1334 = vpack.c.b16 %v1002, %v998
    %v1335 = vpack.c.b16 %v1007, %v1003
    %v1336 = vpack.c.b16 %v1008, %v1004
    %v1337 = vpack.c.b16 %v1009, %v1005
    %v1338 = vpack.c.b16 %v1010, %v1006
    %v1339 = vpack.c.b16 %v1015, %v1011
    %v1340 = vpack.c.b16 %v1016, %v1012
    %v1341 = vpack.c.b16 %v1017, %v1013
    %v1342 = vpack.c.b16 %v1018, %v1014
    %v1343 = vpack.c.b16 %v1023, %v1019
    %v1344 = vpack.c.b16 %v1024, %v1020
    %v1345 = vpack.c.b16 %v1025, %v1021
    %v1346 = vpack.c.b16 %v1026, %v1022
    %v1347 = vpack.c.b16 %v1031, %v1027
    %v1348 = vpack.c.b16 %v1032, %v1028
    %v1349 = vpack.c.b16 %v1033, %v1029
    %v1350 = vpack.c.b16 %v1034, %v1030
    %v1351 = vpack.c.b16 %v1039, %v1035
    %v1352 = vpack.c.b16 %v1040, %v1036
    %v1353 = vpack.c.b16 %v1041, %v1037
    %v1354 = vpack.c.b16 %v1042, %v1038
    %v1355 = vpack.c.b16 %v1047, %v1043
    %v1356 = vpack.c.b16 %v1048, %v1044
    %v1357 = vpack.c.b16 %v1049, %v1045
    %v1358 = vpack.c.b16 %v1050, %v1046
    %v1359 = vpack.c.b16 %v1055, %v1051
    %v1360 = vpack.c.b16 %v1056, %v1052
    %v1361 = vpack.c.b16 %v1057, %v1053
    %v1362 = vpack.c.b16 %v1058, %v1054
    %v1363 = vpack.c.b16 %v1063, %v1059
    %v1364 = vpack.c.b16 %v1064, %v1060
    %v1365 = vpack.c.b16 %v1065, %v1061
    %v1366 = vpack.c.b16 %v1066, %v1062
    %v1367 = vpack.c.b16 %v1071, %v1067
    %v1368 = vpack.c.b16 %v1072, %v1068
    %v1369 = vpack.c.b16 %v1073, %v1069
    %v1370 = vpack.c.b16 %v1074, %v1070
    %v1371 = vpack.c.b16 %v1079, %v1075
    %v1372 = vpack.c.b16 %v1080, %v1076
    %v1373 = vpack.c.b16 %v1081, %v1077
    %v1374 = vpack.c.b16 %v1082, %v1078
    %v1375 = vpack.c.b16 %v1087, %v1083
    %v1376 = vpack.c.b16 %v1088, %v1084
    %v1377 = vpack.c.b16 %v1089, %v1085
    %v1378 = vpack.c.b16 %v1090, %v1086
    %v1379 = vpack.c.b16 %v1095, %v1091
    %v1380 = vpack.c.b16 %v1096, %v1092
    %v1381 = vpack.c.b16 %v1097, %v1093
    %v1382 = vpack.c.b16 %v1098, %v1094
    %v1383 = vpack.c.b16 %v1103, %v1099
    %v1384 = vpack.c.b16 %v1104, %v1100
    %v1385 = vpack.c.b16 %v1105, %v1101
    %v1386 = vpack.c.b16 %v1106, %v1102
    %v1387 = vpack.c.b16 %v1111, %v1107
    %v1388 = vpack.c.b16 %v1112, %v1108
    %v1389 = vpack.c.b16 %v1113, %v1109
    %v1390 = vpack.c.b16 %v1114, %v1110
    %v1391 = vpack.c.b16 %v1119, %v1115
    %v1392 = vpack.c.b16 %v1120, %v1116
    %v1393 = vpack.c.b16 %v1121, %v1117
    %v1394 = vpack.c.b16 %v1122, %v1118
    %v1395 = vpack.c.b16 %v1127, %v1123
    %v1396 = vpack.c.b16 %v1128, %v1124
    %v1397 = vpack.c.b16 %v1129, %v1125
    %v1398 = vpack.c.b16 %v1130, %v1126
    %v1399 = vpack.c.b16 %v1135, %v1131
    %v1400 = vpack.c.b16 %v1136, %v1132
    %v1401 = vpack.c.b16 %v1137, %v1133
    %v1402 = vpack.c.b16 %v1138, %v1134
    %v1403 = vpack.c.b16 %v1143, %v1139
    %v1404 = vpack.c.b16 %v1144, %v1140
    %v1405 = vpack.c.b16 %v1145, %v1141
    %v1406 = vpack.c.b16 %v1146, %v1142
    %v1407 = vpack.c.b16 %v1151, %v1147
    %v1408 = vpack.c.b16 %v1152, %v1148
    %v1409 = vpack.c.b16 %v1153, %v1149
    %v1410 = vpack.c.b16 %v1154, %v1150
    %1667 = vmatpush.bf16.msra.mxu0 %v1183
    %1668 = vmatpush.bf16.msra.mxu0 %v1179
    %1669 = vmatpush.bf16.msra.mxu0 %v1175
    %1670 = vmatpush.bf16.msra.mxu0 %v1171
    %1671 = vmatpush.bf16.msra.mxu0 %v1167
    %1672 = vmatpush.bf16.msra.mxu0 %v1163
    %1673 = vmatpush.bf16.msra.mxu0 %v1159
    %1674 = vmatpush.bf16.msra.mxu0 %v1155
    %1675 = vmatmul.bf16.gmra.mxu0 %v371
    %v1676 = vpop.f32.mrf.mxu0
    %v1677 = vadd.f32 %v339, %v1676
    %v1678 = vpop.f32.mrf.mxu0
    %v1679 = vadd.f32 %v339, %v1678
    %1680 = vdwg.mxu0
    %1681 = vmatpush.bf16.msra.mxu0 %v1215
    %1682 = vmatpush.bf16.msra.mxu0 %v1211
    %1683 = vmatpush.bf16.msra.mxu0 %v1207
    %1684 = vmatpush.bf16.msra.mxu0 %v1203
    %1685 = vmatpush.bf16.msra.mxu0 %v1199
    %1686 = vmatpush.bf16.msra.mxu0 %v1195
    %1687 = vmatpush.bf16.msra.mxu0 %v1191
    %1688 = vmatpush.bf16.msra.mxu0 %v1187
    %1689 = vmatmul.bf16.gmra.mxu0 %v372
    %v1690 = vpop.f32.mrf.mxu0
    %v1691 = vadd.f32 %v1677, %v1690
    %v1692 = vpop.f32.mrf.mxu0
    %v1693 = vadd.f32 %v1679, %v1692
    %1694 = vdwg.mxu0
    %1695 = vmatpush.bf16.msra.mxu0 %v1247
    %1696 = vmatpush.bf16.msra.mxu0 %v1243
    %1697 = vmatpush.bf16.msra.mxu0 %v1239
    %1698 = vmatpush.bf16.msra.mxu0 %v1235
    %1699 = vmatpush.bf16.msra.mxu0 %v1231
    %1700 = vmatpush.bf16.msra.mxu0 %v1227
    %1701 = vmatpush.bf16.msra.mxu0 %v1223
    %1702 = vmatpush.bf16.msra.mxu0 %v1219
    %1703 = vmatmul.bf16.gmra.mxu0 %v373
    %v1704 = vpop.f32.mrf.mxu0
    %v1705 = vadd.f32 %v1691, %v1704
    %v1706 = vpop.f32.mrf.mxu0
    %v1707 = vadd.f32 %v1693, %v1706
    %1708 = vdwg.mxu0
    %1709 = vmatpush.bf16.msra.mxu0 %v1279
    %1710 = vmatpush.bf16.msra.mxu0 %v1275
    %1711 = vmatpush.bf16.msra.mxu0 %v1271
    %1712 = vmatpush.bf16.msra.mxu0 %v1267
    %1713 = vmatpush.bf16.msra.mxu0 %v1263
    %1714 = vmatpush.bf16.msra.mxu0 %v1259
    %1715 = vmatpush.bf16.msra.mxu0 %v1255
    %1716 = vmatpush.bf16.msra.mxu0 %v1251
    %1717 = vmatmul.bf16.gmra.mxu0 %v374
    %v1718 = vpop.f32.mrf.mxu0
    %v1719 = vadd.f32 %v1705, %v1718
    %v1720 = vpop.f32.mrf.mxu0
    %v1721 = vadd.f32 %v1707, %v1720
    %1722 = vdwg.mxu0
    %1723 = vmatpush.bf16.msra.mxu0 %v1311
    %1724 = vmatpush.bf16.msra.mxu0 %v1307
    %1725 = vmatpush.bf16.msra.mxu0 %v1303
    %1726 = vmatpush.bf16.msra.mxu0 %v1299
    %1727 = vmatpush.bf16.msra.mxu0 %v1295
    %1728 = vmatpush.bf16.msra.mxu0 %v1291
    %1729 = vmatpush.bf16.msra.mxu0 %v1287
    %1730 = vmatpush.bf16.msra.mxu0 %v1283
    %1731 = vmatmul.bf16.gmra.mxu0 %v375
    %v1732 = vpop.f32.mrf.mxu0
    %v1733 = vadd.f32 %v1719, %v1732
    %v1734 = vpop.f32.mrf.mxu0
    %v1735 = vadd.f32 %v1721, %v1734
    %1736 = vdwg.mxu0
    %1737 = vmatpush.bf16.msra.mxu0 %v1343
    %1738 = vmatpush.bf16.msra.mxu0 %v1339
    %1739 = vmatpush.bf16.msra.mxu0 %v1335
    %1740 = vmatpush.bf16.msra.mxu0 %v1331
    %1741 = vmatpush.bf16.msra.mxu0 %v1327
    %1742 = vmatpush.bf16.msra.mxu0 %v1323
    %1743 = vmatpush.bf16.msra.mxu0 %v1319
    %1744 = vmatpush.bf16.msra.mxu0 %v1315
    %1745 = vmatmul.bf16.gmra.mxu0 %v376
    %v1746 = vpop.f32.mrf.mxu0
    %v1747 = vadd.f32 %v1733, %v1746
    %v1748 = vpop.f32.mrf.mxu0
    %v1749 = vadd.f32 %v1735, %v1748
    %1750 = vdwg.mxu0
    %1751 = vmatpush.bf16.msra.mxu0 %v1375
    %1752 = vmatpush.bf16.msra.mxu0 %v1371
    %1753 = vmatpush.bf16.msra.mxu0 %v1367
    %1754 = vmatpush.bf16.msra.mxu0 %v1363
    %1755 = vmatpush.bf16.msra.mxu0 %v1359
    %1756 = vmatpush.bf16.msra.mxu0 %v1355
    %1757 = vmatpush.bf16.msra.mxu0 %v1351
    %1758 = vmatpush.bf16.msra.mxu0 %v1347
    %1759 = vmatmul.bf16.gmra.mxu0 %v377
    %v1760 = vpop.f32.mrf.mxu0
    %v1761 = vadd.f32 %v1747, %v1760
    %v1762 = vpop.f32.mrf.mxu0
    %v1763 = vadd.f32 %v1749, %v1762
    %1764 = vdwg.mxu0
    %1765 = vmatpush.bf16.msra.mxu0 %v1407
    %1766 = vmatpush.bf16.msra.mxu0 %v1403
    %1767 = vmatpush.bf16.msra.mxu0 %v1399
    %1768 = vmatpush.bf16.msra.mxu0 %v1395
    %1769 = vmatpush.bf16.msra.mxu0 %v1391
    %1770 = vmatpush.bf16.msra.mxu0 %v1387
    %1771 = vmatpush.bf16.msra.mxu0 %v1383
    %1772 = vmatpush.bf16.msra.mxu0 %v1379
    %1773 = vmatmul.bf16.gmra.mxu0 %v378
    %v1774 = vpop.f32.mrf.mxu0
    %v1775 = vadd.f32 %v1761, %v1774
    %v1776 = vpop.f32.mrf.mxu0
    %v1777 = vadd.f32 %v1763, %v1776
    %1778 = vdwg.mxu0
    %1779 = vmatpush.bf16.msra.mxu0 %v1184
    %1780 = vmatpush.bf16.msra.mxu0 %v1180
    %1781 = vmatpush.bf16.msra.mxu0 %v1176
    %1782 = vmatpush.bf16.msra.mxu0 %v1172
    %1783 = vmatpush.bf16.msra.mxu0 %v1168
    %1784 = vmatpush.bf16.msra.mxu0 %v1164
    %1785 = vmatpush.bf16.msra.mxu0 %v1160
    %1786 = vmatpush.bf16.msra.mxu0 %v1156
    %1787 = vmatmul.bf16.gmra.mxu0 %v371
    %v1788 = vpop.f32.mrf.mxu0
    %v1789 = vadd.f32 %v340, %v1788
    %v1790 = vpop.f32.mrf.mxu0
    %v1791 = vadd.f32 %v340, %v1790
    %1792 = vdwg.mxu0
    %1793 = vmatpush.bf16.msra.mxu0 %v1216
    %1794 = vmatpush.bf16.msra.mxu0 %v1212
    %1795 = vmatpush.bf16.msra.mxu0 %v1208
    %1796 = vmatpush.bf16.msra.mxu0 %v1204
    %1797 = vmatpush.bf16.msra.mxu0 %v1200
    %1798 = vmatpush.bf16.msra.mxu0 %v1196
    %1799 = vmatpush.bf16.msra.mxu0 %v1192
    %1800 = vmatpush.bf16.msra.mxu0 %v1188
    %1801 = vmatmul.bf16.gmra.mxu0 %v372
    %v1802 = vpop.f32.mrf.mxu0
    %v1803 = vadd.f32 %v1789, %v1802
    %v1804 = vpop.f32.mrf.mxu0
    %v1805 = vadd.f32 %v1791, %v1804
    %1806 = vdwg.mxu0
    %1807 = vmatpush.bf16.msra.mxu0 %v1248
    %1808 = vmatpush.bf16.msra.mxu0 %v1244
    %1809 = vmatpush.bf16.msra.mxu0 %v1240
    %1810 = vmatpush.bf16.msra.mxu0 %v1236
    %1811 = vmatpush.bf16.msra.mxu0 %v1232
    %1812 = vmatpush.bf16.msra.mxu0 %v1228
    %1813 = vmatpush.bf16.msra.mxu0 %v1224
    %1814 = vmatpush.bf16.msra.mxu0 %v1220
    %1815 = vmatmul.bf16.gmra.mxu0 %v373
    %v1816 = vpop.f32.mrf.mxu0
    %v1817 = vadd.f32 %v1803, %v1816
    %v1818 = vpop.f32.mrf.mxu0
    %v1819 = vadd.f32 %v1805, %v1818
    %1820 = vdwg.mxu0
    %1821 = vmatpush.bf16.msra.mxu0 %v1280
    %1822 = vmatpush.bf16.msra.mxu0 %v1276
    %1823 = vmatpush.bf16.msra.mxu0 %v1272
    %1824 = vmatpush.bf16.msra.mxu0 %v1268
    %1825 = vmatpush.bf16.msra.mxu0 %v1264
    %1826 = vmatpush.bf16.msra.mxu0 %v1260
    %1827 = vmatpush.bf16.msra.mxu0 %v1256
    %1828 = vmatpush.bf16.msra.mxu0 %v1252
    %1829 = vmatmul.bf16.gmra.mxu0 %v374
    %v1830 = vpop.f32.mrf.mxu0
    %v1831 = vadd.f32 %v1817, %v1830
    %v1832 = vpop.f32.mrf.mxu0
    %v1833 = vadd.f32 %v1819, %v1832
    %1834 = vdwg.mxu0
    %1835 = vmatpush.bf16.msra.mxu0 %v1312
    %1836 = vmatpush.bf16.msra.mxu0 %v1308
    %1837 = vmatpush.bf16.msra.mxu0 %v1304
    %1838 = vmatpush.bf16.msra.mxu0 %v1300
    %1839 = vmatpush.bf16.msra.mxu0 %v1296
    %1840 = vmatpush.bf16.msra.mxu0 %v1292
    %1841 = vmatpush.bf16.msra.mxu0 %v1288
    %1842 = vmatpush.bf16.msra.mxu0 %v1284
    %1843 = vmatmul.bf16.gmra.mxu0 %v375
    %v1844 = vpop.f32.mrf.mxu0
    %v1845 = vadd.f32 %v1831, %v1844
    %v1846 = vpop.f32.mrf.mxu0
    %v1847 = vadd.f32 %v1833, %v1846
    %1848 = vdwg.mxu0
    %1849 = vmatpush.bf16.msra.mxu0 %v1344
    %1850 = vmatpush.bf16.msra.mxu0 %v1340
    %1851 = vmatpush.bf16.msra.mxu0 %v1336
    %1852 = vmatpush.bf16.msra.mxu0 %v1332
    %1853 = vmatpush.bf16.msra.mxu0 %v1328
    %1854 = vmatpush.bf16.msra.mxu0 %v1324
    %1855 = vmatpush.bf16.msra.mxu0 %v1320
    %1856 = vmatpush.bf16.msra.mxu0 %v1316
    %1857 = vmatmul.bf16.gmra.mxu0 %v376
    %v1858 = vpop.f32.mrf.mxu0
    %v1859 = vadd.f32 %v1845, %v1858
    %v1860 = vpop.f32.mrf.mxu0
    %v1861 = vadd.f32 %v1847, %v1860
    %1862 = vdwg.mxu0
    %1863 = vmatpush.bf16.msra.mxu0 %v1376
    %1864 = vmatpush.bf16.msra.mxu0 %v1372
    %1865 = vmatpush.bf16.msra.mxu0 %v1368
    %1866 = vmatpush.bf16.msra.mxu0 %v1364
    %1867 = vmatpush.bf16.msra.mxu0 %v1360
    %1868 = vmatpush.bf16.msra.mxu0 %v1356
    %1869 = vmatpush.bf16.msra.mxu0 %v1352
    %1870 = vmatpush.bf16.msra.mxu0 %v1348
    %1871 = vmatmul.bf16.gmra.mxu0 %v377
    %v1872 = vpop.f32.mrf.mxu0
    %v1873 = vadd.f32 %v1859, %v1872
    %v1874 = vpop.f32.mrf.mxu0
    %v1875 = vadd.f32 %v1861, %v1874
    %1876 = vdwg.mxu0
    %1877 = vmatpush.bf16.msra.mxu0 %v1408
    %1878 = vmatpush.bf16.msra.mxu0 %v1404
    %1879 = vmatpush.bf16.msra.mxu0 %v1400
    %1880 = vmatpush.bf16.msra.mxu0 %v1396
    %1881 = vmatpush.bf16.msra.mxu0 %v1392
    %1882 = vmatpush.bf16.msra.mxu0 %v1388
    %1883 = vmatpush.bf16.msra.mxu0 %v1384
    %1884 = vmatpush.bf16.msra.mxu0 %v1380
    %1885 = vmatmul.bf16.gmra.mxu0 %v378
    %v1886 = vpop.f32.mrf.mxu0
    %v1887 = vadd.f32 %v1873, %v1886
    %v1888 = vpop.f32.mrf.mxu0
    %v1889 = vadd.f32 %v1875, %v1888
    %1890 = vdwg.mxu0
    %1891 = vmatpush.bf16.msra.mxu0 %v1185
    %1892 = vmatpush.bf16.msra.mxu0 %v1181
    %1893 = vmatpush.bf16.msra.mxu0 %v1177
    %1894 = vmatpush.bf16.msra.mxu0 %v1173
    %1895 = vmatpush.bf16.msra.mxu0 %v1169
    %1896 = vmatpush.bf16.msra.mxu0 %v1165
    %1897 = vmatpush.bf16.msra.mxu0 %v1161
    %1898 = vmatpush.bf16.msra.mxu0 %v1157
    %1899 = vmatmul.bf16.gmra.mxu0 %v371
    %v1900 = vpop.f32.mrf.mxu0
    %v1901 = vadd.f32 %v341, %v1900
    %v1902 = vpop.f32.mrf.mxu0
    %v1903 = vadd.f32 %v341, %v1902
    %1904 = vdwg.mxu0
    %1905 = vmatpush.bf16.msra.mxu0 %v1217
    %1906 = vmatpush.bf16.msra.mxu0 %v1213
    %1907 = vmatpush.bf16.msra.mxu0 %v1209
    %1908 = vmatpush.bf16.msra.mxu0 %v1205
    %1909 = vmatpush.bf16.msra.mxu0 %v1201
    %1910 = vmatpush.bf16.msra.mxu0 %v1197
    %1911 = vmatpush.bf16.msra.mxu0 %v1193
    %1912 = vmatpush.bf16.msra.mxu0 %v1189
    %1913 = vmatmul.bf16.gmra.mxu0 %v372
    %v1914 = vpop.f32.mrf.mxu0
    %v1915 = vadd.f32 %v1901, %v1914
    %v1916 = vpop.f32.mrf.mxu0
    %v1917 = vadd.f32 %v1903, %v1916
    %1918 = vdwg.mxu0
    %1919 = vmatpush.bf16.msra.mxu0 %v1249
    %1920 = vmatpush.bf16.msra.mxu0 %v1245
    %1921 = vmatpush.bf16.msra.mxu0 %v1241
    %1922 = vmatpush.bf16.msra.mxu0 %v1237
    %1923 = vmatpush.bf16.msra.mxu0 %v1233
    %1924 = vmatpush.bf16.msra.mxu0 %v1229
    %1925 = vmatpush.bf16.msra.mxu0 %v1225
    %1926 = vmatpush.bf16.msra.mxu0 %v1221
    %1927 = vmatmul.bf16.gmra.mxu0 %v373
    %v1928 = vpop.f32.mrf.mxu0
    %v1929 = vadd.f32 %v1915, %v1928
    %v1930 = vpop.f32.mrf.mxu0
    %v1931 = vadd.f32 %v1917, %v1930
    %1932 = vdwg.mxu0
    %1933 = vmatpush.bf16.msra.mxu0 %v1281
    %1934 = vmatpush.bf16.msra.mxu0 %v1277
    %1935 = vmatpush.bf16.msra.mxu0 %v1273
    %1936 = vmatpush.bf16.msra.mxu0 %v1269
    %1937 = vmatpush.bf16.msra.mxu0 %v1265
    %1938 = vmatpush.bf16.msra.mxu0 %v1261
    %1939 = vmatpush.bf16.msra.mxu0 %v1257
    %1940 = vmatpush.bf16.msra.mxu0 %v1253
    %1941 = vmatmul.bf16.gmra.mxu0 %v374
    %v1942 = vpop.f32.mrf.mxu0
    %v1943 = vadd.f32 %v1929, %v1942
    %v1944 = vpop.f32.mrf.mxu0
    %v1945 = vadd.f32 %v1931, %v1944
    %1946 = vdwg.mxu0
    %1947 = vmatpush.bf16.msra.mxu0 %v1313
    %1948 = vmatpush.bf16.msra.mxu0 %v1309
    %1949 = vmatpush.bf16.msra.mxu0 %v1305
    %1950 = vmatpush.bf16.msra.mxu0 %v1301
    %1951 = vmatpush.bf16.msra.mxu0 %v1297
    %1952 = vmatpush.bf16.msra.mxu0 %v1293
    %1953 = vmatpush.bf16.msra.mxu0 %v1289
    %1954 = vmatpush.bf16.msra.mxu0 %v1285
    %1955 = vmatmul.bf16.gmra.mxu0 %v375
    %v1956 = vpop.f32.mrf.mxu0
    %v1957 = vadd.f32 %v1943, %v1956
    %v1958 = vpop.f32.mrf.mxu0
    %v1959 = vadd.f32 %v1945, %v1958
    %1960 = vdwg.mxu0
    %1961 = vmatpush.bf16.msra.mxu0 %v1345
    %1962 = vmatpush.bf16.msra.mxu0 %v1341
    %1963 = vmatpush.bf16.msra.mxu0 %v1337
    %1964 = vmatpush.bf16.msra.mxu0 %v1333
    %1965 = vmatpush.bf16.msra.mxu0 %v1329
    %1966 = vmatpush.bf16.msra.mxu0 %v1325
    %1967 = vmatpush.bf16.msra.mxu0 %v1321
    %1968 = vmatpush.bf16.msra.mxu0 %v1317
    %1969 = vmatmul.bf16.gmra.mxu0 %v376
    %v1970 = vpop.f32.mrf.mxu0
    %v1971 = vadd.f32 %v1957, %v1970
    %v1972 = vpop.f32.mrf.mxu0
    %v1973 = vadd.f32 %v1959, %v1972
    %1974 = vdwg.mxu0
    %1975 = vmatpush.bf16.msra.mxu0 %v1377
    %1976 = vmatpush.bf16.msra.mxu0 %v1373
    %1977 = vmatpush.bf16.msra.mxu0 %v1369
    %1978 = vmatpush.bf16.msra.mxu0 %v1365
    %1979 = vmatpush.bf16.msra.mxu0 %v1361
    %1980 = vmatpush.bf16.msra.mxu0 %v1357
    %1981 = vmatpush.bf16.msra.mxu0 %v1353
    %1982 = vmatpush.bf16.msra.mxu0 %v1349
    %1983 = vmatmul.bf16.gmra.mxu0 %v377
    %v1984 = vpop.f32.mrf.mxu0
    %v1985 = vadd.f32 %v1971, %v1984
    %v1986 = vpop.f32.mrf.mxu0
    %v1987 = vadd.f32 %v1973, %v1986
    %1988 = vdwg.mxu0
    %1989 = vmatpush.bf16.msra.mxu0 %v1409
    %1990 = vmatpush.bf16.msra.mxu0 %v1405
    %1991 = vmatpush.bf16.msra.mxu0 %v1401
    %1992 = vmatpush.bf16.msra.mxu0 %v1397
    %1993 = vmatpush.bf16.msra.mxu0 %v1393
    %1994 = vmatpush.bf16.msra.mxu0 %v1389
    %1995 = vmatpush.bf16.msra.mxu0 %v1385
    %1996 = vmatpush.bf16.msra.mxu0 %v1381
    %1997 = vmatmul.bf16.gmra.mxu0 %v378
    %v1998 = vpop.f32.mrf.mxu0
    %v1999 = vadd.f32 %v1985, %v1998
    %v2000 = vpop.f32.mrf.mxu0
    %v2001 = vadd.f32 %v1987, %v2000
    %2002 = vdwg.mxu0
    %2003 = vmatpush.bf16.msra.mxu0 %v1186
    %2004 = vmatpush.bf16.msra.mxu0 %v1182
    %2005 = vmatpush.bf16.msra.mxu0 %v1178
    %2006 = vmatpush.bf16.msra.mxu0 %v1174
    %2007 = vmatpush.bf16.msra.mxu0 %v1170
    %2008 = vmatpush.bf16.msra.mxu0 %v1166
    %2009 = vmatpush.bf16.msra.mxu0 %v1162
    %2010 = vmatpush.bf16.msra.mxu0 %v1158
    %2011 = vmatmul.bf16.gmra.mxu0 %v371
    %v2012 = vpop.f32.mrf.mxu0
    %v2013 = vadd.f32 %v342, %v2012
    %v2014 = vpop.f32.mrf.mxu0
    %v2015 = vadd.f32 %v342, %v2014
    %2016 = vdwg.mxu0
    %2017 = vmatpush.bf16.msra.mxu0 %v1218
    %2018 = vmatpush.bf16.msra.mxu0 %v1214
    %2019 = vmatpush.bf16.msra.mxu0 %v1210
    %2020 = vmatpush.bf16.msra.mxu0 %v1206
    %2021 = vmatpush.bf16.msra.mxu0 %v1202
    %2022 = vmatpush.bf16.msra.mxu0 %v1198
    %2023 = vmatpush.bf16.msra.mxu0 %v1194
    %2024 = vmatpush.bf16.msra.mxu0 %v1190
    %2025 = vmatmul.bf16.gmra.mxu0 %v372
    %v2026 = vpop.f32.mrf.mxu0
    %v2027 = vadd.f32 %v2013, %v2026
    %v2028 = vpop.f32.mrf.mxu0
    %v2029 = vadd.f32 %v2015, %v2028
    %2030 = vdwg.mxu0
    %2031 = vmatpush.bf16.msra.mxu0 %v1250
    %2032 = vmatpush.bf16.msra.mxu0 %v1246
    %2033 = vmatpush.bf16.msra.mxu0 %v1242
    %2034 = vmatpush.bf16.msra.mxu0 %v1238
    %2035 = vmatpush.bf16.msra.mxu0 %v1234
    %2036 = vmatpush.bf16.msra.mxu0 %v1230
    %2037 = vmatpush.bf16.msra.mxu0 %v1226
    %2038 = vmatpush.bf16.msra.mxu0 %v1222
    %2039 = vmatmul.bf16.gmra.mxu0 %v373
    %v2040 = vpop.f32.mrf.mxu0
    %v2041 = vadd.f32 %v2027, %v2040
    %v2042 = vpop.f32.mrf.mxu0
    %v2043 = vadd.f32 %v2029, %v2042
    %2044 = vdwg.mxu0
    %2045 = vmatpush.bf16.msra.mxu0 %v1282
    %2046 = vmatpush.bf16.msra.mxu0 %v1278
    %2047 = vmatpush.bf16.msra.mxu0 %v1274
    %2048 = vmatpush.bf16.msra.mxu0 %v1270
    %2049 = vmatpush.bf16.msra.mxu0 %v1266
    %2050 = vmatpush.bf16.msra.mxu0 %v1262
    %2051 = vmatpush.bf16.msra.mxu0 %v1258
    %2052 = vmatpush.bf16.msra.mxu0 %v1254
    %2053 = vmatmul.bf16.gmra.mxu0 %v374
    %v2054 = vpop.f32.mrf.mxu0
    %v2055 = vadd.f32 %v2041, %v2054
    %v2056 = vpop.f32.mrf.mxu0
    %v2057 = vadd.f32 %v2043, %v2056
    %2058 = vdwg.mxu0
    %2059 = vmatpush.bf16.msra.mxu0 %v1314
    %2060 = vmatpush.bf16.msra.mxu0 %v1310
    %2061 = vmatpush.bf16.msra.mxu0 %v1306
    %2062 = vmatpush.bf16.msra.mxu0 %v1302
    %2063 = vmatpush.bf16.msra.mxu0 %v1298
    %2064 = vmatpush.bf16.msra.mxu0 %v1294
    %2065 = vmatpush.bf16.msra.mxu0 %v1290
    %2066 = vmatpush.bf16.msra.mxu0 %v1286
    %2067 = vmatmul.bf16.gmra.mxu0 %v375
    %v2068 = vpop.f32.mrf.mxu0
    %v2069 = vadd.f32 %v2055, %v2068
    %v2070 = vpop.f32.mrf.mxu0
    %v2071 = vadd.f32 %v2057, %v2070
    %2072 = vdwg.mxu0
    %2073 = vmatpush.bf16.msra.mxu0 %v1346
    %2074 = vmatpush.bf16.msra.mxu0 %v1342
    %2075 = vmatpush.bf16.msra.mxu0 %v1338
    %2076 = vmatpush.bf16.msra.mxu0 %v1334
    %2077 = vmatpush.bf16.msra.mxu0 %v1330
    %2078 = vmatpush.bf16.msra.mxu0 %v1326
    %2079 = vmatpush.bf16.msra.mxu0 %v1322
    %2080 = vmatpush.bf16.msra.mxu0 %v1318
    %2081 = vmatmul.bf16.gmra.mxu0 %v376
    %v2082 = vpop.f32.mrf.mxu0
    %v2083 = vadd.f32 %v2069, %v2082
    %v2084 = vpop.f32.mrf.mxu0
    %v2085 = vadd.f32 %v2071, %v2084
    %2086 = vdwg.mxu0
    %2087 = vmatpush.bf16.msra.mxu0 %v1378
    %2088 = vmatpush.bf16.msra.mxu0 %v1374
    %2089 = vmatpush.bf16.msra.mxu0 %v1370
    %2090 = vmatpush.bf16.msra.mxu0 %v1366
    %2091 = vmatpush.bf16.msra.mxu0 %v1362
    %2092 = vmatpush.bf16.msra.mxu0 %v1358
    %2093 = vmatpush.bf16.msra.mxu0 %v1354
    %2094 = vmatpush.bf16.msra.mxu0 %v1350
    %2095 = vmatmul.bf16.gmra.mxu0 %v377
    %v2096 = vpop.f32.mrf.mxu0
    %v2097 = vadd.f32 %v2083, %v2096
    %v2098 = vpop.f32.mrf.mxu0
    %v2099 = vadd.f32 %v2085, %v2098
    %2100 = vdwg.mxu0
    %2101 = vmatpush.bf16.msra.mxu0 %v1410
    %2102 = vmatpush.bf16.msra.mxu0 %v1406
    %2103 = vmatpush.bf16.msra.mxu0 %v1402
    %2104 = vmatpush.bf16.msra.mxu0 %v1398
    %2105 = vmatpush.bf16.msra.mxu0 %v1394
    %2106 = vmatpush.bf16.msra.mxu0 %v1390
    %2107 = vmatpush.bf16.msra.mxu0 %v1386
    %2108 = vmatpush.bf16.msra.mxu0 %v1382
    %2109 = vmatmul.bf16.gmra.mxu0 %v378
    %v2110 = vpop.f32.mrf.mxu0
    %v2111 = vadd.f32 %v2097, %v2110
    %v2112 = vpop.f32.mrf.mxu0
    %v2113 = vadd.f32 %v2099, %v2112
    %2114 = vdwg.mxu0
    %v2115 = vmax.f32 %v1775, 0.0
    %v2116 = vmax.f32 %v1887, 0.0
    %v2117 = vmax.f32 %v1999, 0.0
    %v2118 = vmax.f32 %v2111, 0.0
    %v2119 = vmax.f32 %v1777, 0.0
    %v2120 = vmax.f32 %v1889, 0.0
    %v2121 = vmax.f32 %v2001, 0.0
    %v2122 = vmax.f32 %v2113, 0.0
    %v2123 = vpack.c.bf16 %v2119, %v2115
    %v2124 = vpack.c.bf16 %v2120, %v2116
    %v2125 = vpack.c.bf16 %v2121, %v2117
    %v2126 = vpack.c.bf16 %v2122, %v2118
    %v2127 = vld [vmem:[#allocation4] sm:$0xff]
    %v2128 = vld [vmem:[#allocation4 + $0x8] sm:$0xff]
    %v2129 = vld [vmem:[#allocation4 + $0x10] sm:$0xff]
    %v2130 = vld [vmem:[#allocation4 + $0x18] sm:$0xff]
    %v2131 = vld [vmem:[#allocation4 + $0x20] sm:$0xff]
    %v2132 = vld [vmem:[#allocation4 + $0x28] sm:$0xff]
    %v2133 = vld [vmem:[#allocation4 + $0x30] sm:$0xff]
    %v2134 = vld [vmem:[#allocation4 + $0x38] sm:$0xff]
    %v2135 = vld [vmem:[#allocation4 + $0x40] sm:$0xff]
    %v2136 = vld [vmem:[#allocation4 + $0x48] sm:$0xff]
    %v2137 = vld [vmem:[#allocation4 + $0x50] sm:$0xff]
    %v2138 = vld [vmem:[#allocation4 + $0x58] sm:$0xff]
    %v2139 = vld [vmem:[#allocation4 + $0x60] sm:$0xff]
    %v2140 = vld [vmem:[#allocation4 + $0x68] sm:$0xff]
    %v2141 = vld [vmem:[#allocation4 + $0x70] sm:$0xff]
    %v2142 = vld [vmem:[#allocation4 + $0x78] sm:$0xff]
    %v2143 = vld [vmem:[#allocation4 + $0x80] sm:$0xff]
    %v2144 = vld [vmem:[#allocation4 + $0x88] sm:$0xff]
    %v2145 = vld [vmem:[#allocation4 + $0x90] sm:$0xff]
    %v2146 = vld [vmem:[#allocation4 + $0x98] sm:$0xff]
    %v2147 = vld [vmem:[#allocation4 + $0xa0] sm:$0xff]
    %v2148 = vld [vmem:[#allocation4 + $0xa8] sm:$0xff]
    %v2149 = vld [vmem:[#allocation4 + $0xb0] sm:$0xff]
    %v2150 = vld [vmem:[#allocation4 + $0xb8] sm:$0xff]
    %v2151 = vld [vmem:[#allocation4 + $0xc0] sm:$0xff]
    %v2152 = vld [vmem:[#allocation4 + $0xc8] sm:$0xff]
    %v2153 = vld [vmem:[#allocation4 + $0xd0] sm:$0xff]
    %v2154 = vld [vmem:[#allocation4 + $0xd8] sm:$0xff]
    %v2155 = vld [vmem:[#allocation4 + $0xe0] sm:$0xff]
    %v2156 = vld [vmem:[#allocation4 + $0xe8] sm:$0xff]
    %v2157 = vld [vmem:[#allocation4 + $0xf0] sm:$0xff]
    %v2158 = vld [vmem:[#allocation4 + $0xf8] sm:$0xff]
    %v2159 = vld [vmem:[#allocation4 + $0x100] sm:$0xff]
    %v2160 = vld [vmem:[#allocation4 + $0x108] sm:$0xff]
    %v2161 = vld [vmem:[#allocation4 + $0x110] sm:$0xff]
    %v2162 = vld [vmem:[#allocation4 + $0x118] sm:$0xff]
    %v2163 = vld [vmem:[#allocation4 + $0x120] sm:$0xff]
    %v2164 = vld [vmem:[#allocation4 + $0x128] sm:$0xff]
    %v2165 = vld [vmem:[#allocation4 + $0x130] sm:$0xff]
    %v2166 = vld [vmem:[#allocation4 + $0x138] sm:$0xff]
    %v2167 = vld [vmem:[#allocation4 + $0x140] sm:$0xff]
    %v2168 = vld [vmem:[#allocation4 + $0x148] sm:$0xff]
    %v2169 = vld [vmem:[#allocation4 + $0x150] sm:$0xff]
    %v2170 = vld [vmem:[#allocation4 + $0x158] sm:$0xff]
    %v2171 = vld [vmem:[#allocation4 + $0x160] sm:$0xff]
    %v2172 = vld [vmem:[#allocation4 + $0x168] sm:$0xff]
    %v2173 = vld [vmem:[#allocation4 + $0x170] sm:$0xff]
    %v2174 = vld [vmem:[#allocation4 + $0x178] sm:$0xff]
    %v2175 = vld [vmem:[#allocation4 + $0x180] sm:$0xff]
    %v2176 = vld [vmem:[#allocation4 + $0x188] sm:$0xff]
    %v2177 = vld [vmem:[#allocation4 + $0x190] sm:$0xff]
    %v2178 = vld [vmem:[#allocation4 + $0x198] sm:$0xff]
    %v2179 = vld [vmem:[#allocation4 + $0x1a0] sm:$0xff]
    %v2180 = vld [vmem:[#allocation4 + $0x1a8] sm:$0xff]
    %v2181 = vld [vmem:[#allocation4 + $0x1b0] sm:$0xff]
    %v2182 = vld [vmem:[#allocation4 + $0x1b8] sm:$0xff]
    %v2183 = vld [vmem:[#allocation4 + $0x1c0] sm:$0xff]
    %v2184 = vld [vmem:[#allocation4 + $0x1c8] sm:$0xff]
    %v2185 = vld [vmem:[#allocation4 + $0x1d0] sm:$0xff]
    %v2186 = vld [vmem:[#allocation4 + $0x1d8] sm:$0xff]
    %v2187 = vld [vmem:[#allocation4 + $0x1e0] sm:$0xff]
    %v2188 = vld [vmem:[#allocation4 + $0x1e8] sm:$0xff]
    %v2189 = vld [vmem:[#allocation4 + $0x1f0] sm:$0xff]
    %v2190 = vld [vmem:[#allocation4 + $0x1f8] sm:$0xff]
    %v2191 = vld [vmem:[%s4] sm:$0x3]
    %v2193 = vperm.slane %v2191, 0
    %v2194 = vperm.slane %v2191, 1
    %v2261 = vunpack.c.l.b16 %v2127
    %v2262 = vunpack.c.h.b16 %v2127
    %v2263 = vunpack.c.l.b16 %v2128
    %v2264 = vunpack.c.h.b16 %v2128
    %v2265 = vunpack.c.l.b16 %v2129
    %v2266 = vunpack.c.h.b16 %v2129
    %v2267 = vunpack.c.l.b16 %v2130
    %v2268 = vunpack.c.h.b16 %v2130
    %v2269 = vunpack.c.l.b16 %v2131
    %v2270 = vunpack.c.h.b16 %v2131
    %v2271 = vunpack.c.l.b16 %v2132
    %v2272 = vunpack.c.h.b16 %v2132
    %v2273 = vunpack.c.l.b16 %v2133
    %v2274 = vunpack.c.h.b16 %v2133
    %v2275 = vunpack.c.l.b16 %v2134
    %v2276 = vunpack.c.h.b16 %v2134
    %v2277 = vunpack.c.l.b16 %v2135
    %v2278 = vunpack.c.h.b16 %v2135
    %v2279 = vunpack.c.l.b16 %v2136
    %v2280 = vunpack.c.h.b16 %v2136
    %v2281 = vunpack.c.l.b16 %v2137
    %v2282 = vunpack.c.h.b16 %v2137
    %v2283 = vunpack.c.l.b16 %v2138
    %v2284 = vunpack.c.h.b16 %v2138
    %v2285 = vunpack.c.l.b16 %v2139
    %v2286 = vunpack.c.h.b16 %v2139
    %v2287 = vunpack.c.l.b16 %v2140
    %v2288 = vunpack.c.h.b16 %v2140
    %v2289 = vunpack.c.l.b16 %v2141
    %v2290 = vunpack.c.h.b16 %v2141
    %v2291 = vunpack.c.l.b16 %v2142
    %v2292 = vunpack.c.h.b16 %v2142
    %v2293 = vunpack.c.l.b16 %v2143
    %v2294 = vunpack.c.h.b16 %v2143
    %v2295 = vunpack.c.l.b16 %v2144
    %v2296 = vunpack.c.h.b16 %v2144
    %v2297 = vunpack.c.l.b16 %v2145
    %v2298 = vunpack.c.h.b16 %v2145
    %v2299 = vunpack.c.l.b16 %v2146
    %v2300 = vunpack.c.h.b16 %v2146
    %v2301 = vunpack.c.l.b16 %v2147
    %v2302 = vunpack.c.h.b16 %v2147
    %v2303 = vunpack.c.l.b16 %v2148
    %v2304 = vunpack.c.h.b16 %v2148
    %v2305 = vunpack.c.l.b16 %v2149
    %v2306 = vunpack.c.h.b16 %v2149
    %v2307 = vunpack.c.l.b16 %v2150
    %v2308 = vunpack.c.h.b16 %v2150
    %v2309 = vunpack.c.l.b16 %v2151
    %v2310 = vunpack.c.h.b16 %v2151
    %v2311 = vunpack.c.l.b16 %v2152
    %v2312 = vunpack.c.h.b16 %v2152
    %v2313 = vunpack.c.l.b16 %v2153
    %v2314 = vunpack.c.h.b16 %v2153
    %v2315 = vunpack.c.l.b16 %v2154
    %v2316 = vunpack.c.h.b16 %v2154
    %v2317 = vunpack.c.l.b16 %v2155
    %v2318 = vunpack.c.h.b16 %v2155
    %v2319 = vunpack.c.l.b16 %v2156
    %v2320 = vunpack.c.h.b16 %v2156
    %v2321 = vunpack.c.l.b16 %v2157
    %v2322 = vunpack.c.h.b16 %v2157
    %v2323 = vunpack.c.l.b16 %v2158
    %v2324 = vunpack.c.h.b16 %v2158
    %v2325 = vunpack.c.l.b16 %v2159
    %v2326 = vunpack.c.h.b16 %v2159
    %v2327 = vunpack.c.l.b16 %v2160
    %v2328 = vunpack.c.h.b16 %v2160
    %v2329 = vunpack.c.l.b16 %v2161
    %v2330 = vunpack.c.h.b16 %v2161
    %v2331 = vunpack.c.l.b16 %v2162
    %v2332 = vunpack.c.h.b16 %v2162
    %v2333 = vunpack.c.l.b16 %v2163
    %v2334 = vunpack.c.h.b16 %v2163
    %v2335 = vunpack.c.l.b16 %v2164
    %v2336 = vunpack.c.h.b16 %v2164
    %v2337 = vunpack.c.l.b16 %v2165
    %v2338 = vunpack.c.h.b16 %v2165
    %v2339 = vunpack.c.l.b16 %v2166
    %v2340 = vunpack.c.h.b16 %v2166
    %v2341 = vunpack.c.l.b16 %v2167
    %v2342 = vunpack.c.h.b16 %v2167
    %v2343 = vunpack.c.l.b16 %v2168
    %v2344 = vunpack.c.h.b16 %v2168
    %v2345 = vunpack.c.l.b16 %v2169
    %v2346 = vunpack.c.h.b16 %v2169
    %v2347 = vunpack.c.l.b16 %v2170
    %v2348 = vunpack.c.h.b16 %v2170
    %v2349 = vunpack.c.l.b16 %v2171
    %v2350 = vunpack.c.h.b16 %v2171
    %v2351 = vunpack.c.l.b16 %v2172
    %v2352 = vunpack.c.h.b16 %v2172
    %v2353 = vunpack.c.l.b16 %v2173
    %v2354 = vunpack.c.h.b16 %v2173
    %v2355 = vunpack.c.l.b16 %v2174
    %v2356 = vunpack.c.h.b16 %v2174
    %v2357 = vunpack.c.l.b16 %v2175
    %v2358 = vunpack.c.h.b16 %v2175
    %v2359 = vunpack.c.l.b16 %v2176
    %v2360 = vunpack.c.h.b16 %v2176
    %v2361 = vunpack.c.l.b16 %v2177
    %v2362 = vunpack.c.h.b16 %v2177
    %v2363 = vunpack.c.l.b16 %v2178
    %v2364 = vunpack.c.h.b16 %v2178
    %v2365 = vunpack.c.l.b16 %v2179
    %v2366 = vunpack.c.h.b16 %v2179
    %v2367 = vunpack.c.l.b16 %v2180
    %v2368 = vunpack.c.h.b16 %v2180
    %v2369 = vunpack.c.l.b16 %v2181
    %v2370 = vunpack.c.h.b16 %v2181
    %v2371 = vunpack.c.l.b16 %v2182
    %v2372 = vunpack.c.h.b16 %v2182
    %v2373 = vunpack.c.l.b16 %v2183
    %v2374 = vunpack.c.h.b16 %v2183
    %v2375 = vunpack.c.l.b16 %v2184
    %v2376 = vunpack.c.h.b16 %v2184
    %v2377 = vunpack.c.l.b16 %v2185
    %v2378 = vunpack.c.h.b16 %v2185
    %v2379 = vunpack.c.l.b16 %v2186
    %v2380 = vunpack.c.h.b16 %v2186
    %v2381 = vunpack.c.l.b16 %v2187
    %v2382 = vunpack.c.h.b16 %v2187
    %v2383 = vunpack.c.l.b16 %v2188
    %v2384 = vunpack.c.h.b16 %v2188
    %v2385 = vunpack.c.l.b16 %v2189
    %v2386 = vunpack.c.h.b16 %v2189
    %v2387 = vunpack.c.l.b16 %v2190
    %v2388 = vunpack.c.h.b16 %v2190
    %v2389 = vpack.c.b16 %v2263, %v2261
    %v2390 = vpack.c.b16 %v2264, %v2262
    %v2391 = vpack.c.b16 %v2267, %v2265
    %v2392 = vpack.c.b16 %v2268, %v2266
    %v2393 = vpack.c.b16 %v2271, %v2269
    %v2394 = vpack.c.b16 %v2272, %v2270
    %v2395 = vpack.c.b16 %v2275, %v2273
    %v2396 = vpack.c.b16 %v2276, %v2274
    %v2397 = vpack.c.b16 %v2279, %v2277
    %v2398 = vpack.c.b16 %v2280, %v2278
    %v2399 = vpack.c.b16 %v2283, %v2281
    %v2400 = vpack.c.b16 %v2284, %v2282
    %v2401 = vpack.c.b16 %v2287, %v2285
    %v2402 = vpack.c.b16 %v2288, %v2286
    %v2403 = vpack.c.b16 %v2291, %v2289
    %v2404 = vpack.c.b16 %v2292, %v2290
    %v2405 = vpack.c.b16 %v2295, %v2293
    %v2406 = vpack.c.b16 %v2296, %v2294
    %v2407 = vpack.c.b16 %v2299, %v2297
    %v2408 = vpack.c.b16 %v2300, %v2298
    %v2409 = vpack.c.b16 %v2303, %v2301
    %v2410 = vpack.c.b16 %v2304, %v2302
    %v2411 = vpack.c.b16 %v2307, %v2305
    %v2412 = vpack.c.b16 %v2308, %v2306
    %v2413 = vpack.c.b16 %v2311, %v2309
    %v2414 = vpack.c.b16 %v2312, %v2310
    %v2415 = vpack.c.b16 %v2315, %v2313
    %v2416 = vpack.c.b16 %v2316, %v2314
    %v2417 = vpack.c.b16 %v2319, %v2317
    %v2418 = vpack.c.b16 %v2320, %v2318
    %v2419 = vpack.c.b16 %v2323, %v2321
    %v2420 = vpack.c.b16 %v2324, %v2322
    %v2421 = vpack.c.b16 %v2327, %v2325
    %v2422 = vpack.c.b16 %v2328, %v2326
    %v2423 = vpack.c.b16 %v2331, %v2329
    %v2424 = vpack.c.b16 %v2332, %v2330
    %v2425 = vpack.c.b16 %v2335, %v2333
    %v2426 = vpack.c.b16 %v2336, %v2334
    %v2427 = vpack.c.b16 %v2339, %v2337
    %v2428 = vpack.c.b16 %v2340, %v2338
    %v2429 = vpack.c.b16 %v2343, %v2341
    %v2430 = vpack.c.b16 %v2344, %v2342
    %v2431 = vpack.c.b16 %v2347, %v2345
    %v2432 = vpack.c.b16 %v2348, %v2346
    %v2433 = vpack.c.b16 %v2351, %v2349
    %v2434 = vpack.c.b16 %v2352, %v2350
    %v2435 = vpack.c.b16 %v2355, %v2353
    %v2436 = vpack.c.b16 %v2356, %v2354
    %v2437 = vpack.c.b16 %v2359, %v2357
    %v2438 = vpack.c.b16 %v2360, %v2358
    %v2439 = vpack.c.b16 %v2363, %v2361
    %v2440 = vpack.c.b16 %v2364, %v2362
    %v2441 = vpack.c.b16 %v2367, %v2365
    %v2442 = vpack.c.b16 %v2368, %v2366
    %v2443 = vpack.c.b16 %v2371, %v2369
    %v2444 = vpack.c.b16 %v2372, %v2370
    %v2445 = vpack.c.b16 %v2375, %v2373
    %v2446 = vpack.c.b16 %v2376, %v2374
    %v2447 = vpack.c.b16 %v2379, %v2377
    %v2448 = vpack.c.b16 %v2380, %v2378
    %v2449 = vpack.c.b16 %v2383, %v2381
    %v2450 = vpack.c.b16 %v2384, %v2382
    %v2451 = vpack.c.b16 %v2387, %v2385
    %v2452 = vpack.c.b16 %v2388, %v2386
    %2517 = vmatpush.bf16.msra.mxu0 %v2403
    %2518 = vmatpush.bf16.msra.mxu0 %v2401
    %2519 = vmatpush.bf16.msra.mxu0 %v2399
    %2520 = vmatpush.bf16.msra.mxu0 %v2397
    %2521 = vmatpush.bf16.msra.mxu0 %v2395
    %2522 = vmatpush.bf16.msra.mxu0 %v2393
    %2523 = vmatpush.bf16.msra.mxu0 %v2391
    %2524 = vmatpush.bf16.msra.mxu0 %v2389
    %2525 = vmatmul.bf16.gmra.mxu0 %v2123
    %v2526 = vpop.f32.mrf.mxu0
    %v2527 = vadd.f32 %v2193, %v2526
    %v2528 = vpop.f32.mrf.mxu0
    %v2529 = vadd.f32 %v2193, %v2528
    %2530 = vdwg.mxu0
    %2531 = vmatpush.bf16.msra.mxu0 %v2419
    %2532 = vmatpush.bf16.msra.mxu0 %v2417
    %2533 = vmatpush.bf16.msra.mxu0 %v2415
    %2534 = vmatpush.bf16.msra.mxu0 %v2413
    %2535 = vmatpush.bf16.msra.mxu0 %v2411
    %2536 = vmatpush.bf16.msra.mxu0 %v2409
    %2537 = vmatpush.bf16.msra.mxu0 %v2407
    %2538 = vmatpush.bf16.msra.mxu0 %v2405
    %2539 = vmatmul.bf16.gmra.mxu0 %v2124
    %v2540 = vpop.f32.mrf.mxu0
    %v2541 = vadd.f32 %v2527, %v2540
    %v2542 = vpop.f32.mrf.mxu0
    %v2543 = vadd.f32 %v2529, %v2542
    %2544 = vdwg.mxu0
    %2545 = vmatpush.bf16.msra.mxu0 %v2435
    %2546 = vmatpush.bf16.msra.mxu0 %v2433
    %2547 = vmatpush.bf16.msra.mxu0 %v2431
    %2548 = vmatpush.bf16.msra.mxu0 %v2429
    %2549 = vmatpush.bf16.msra.mxu0 %v2427
    %2550 = vmatpush.bf16.msra.mxu0 %v2425
    %2551 = vmatpush.bf16.msra.mxu0 %v2423
    %2552 = vmatpush.bf16.msra.mxu0 %v2421
    %2553 = vmatmul.bf16.gmra.mxu0 %v2125
    %v2554 = vpop.f32.mrf.mxu0
    %v2555 = vadd.f32 %v2541, %v2554
    %v2556 = vpop.f32.mrf.mxu0
    %v2557 = vadd.f32 %v2543, %v2556
    %2558 = vdwg.mxu0
    %2559 = vmatpush.bf16.msra.mxu0 %v2451
    %2560 = vmatpush.bf16.msra.mxu0 %v2449
    %2561 = vmatpush.bf16.msra.mxu0 %v2447
    %2562 = vmatpush.bf16.msra.mxu0 %v2445
    %2563 = vmatpush.bf16.msra.mxu0 %v2443
    %2564 = vmatpush.bf16.msra.mxu0 %v2441
    %2565 = vmatpush.bf16.msra.mxu0 %v2439
    %2566 = vmatpush.bf16.msra.mxu0 %v2437
    %2567 = vmatmul.bf16.gmra.mxu0 %v2126
    %v2568 = vpop.f32.mrf.mxu0
    %v2569 = vadd.f32 %v2555, %v2568
    %v2570 = vpop.f32.mrf.mxu0
    %v2571 = vadd.f32 %v2557, %v2570
    %2572 = vdwg.mxu0
    %2573 = vmatpush.bf16.msra.mxu0 %v2404
    %2574 = vmatpush.bf16.msra.mxu0 %v2402
    %2575 = vmatpush.bf16.msra.mxu0 %v2400
    %2576 = vmatpush.bf16.msra.mxu0 %v2398
    %2577 = vmatpush.bf16.msra.mxu0 %v2396
    %2578 = vmatpush.bf16.msra.mxu0 %v2394
    %2579 = vmatpush.bf16.msra.mxu0 %v2392
    %2580 = vmatpush.bf16.msra.mxu0 %v2390
    %2581 = vmatmul.bf16.gmra.mxu0 %v2123
    %v2582 = vpop.f32.mrf.mxu0
    %v2583 = vadd.f32 %v2194, %v2582
    %v2584 = vpop.f32.mrf.mxu0
    %v2585 = vadd.f32 %v2194, %v2584
    %2586 = vdwg.mxu0
    %2587 = vmatpush.bf16.msra.mxu0 %v2420
    %2588 = vmatpush.bf16.msra.mxu0 %v2418
    %2589 = vmatpush.bf16.msra.mxu0 %v2416
    %2590 = vmatpush.bf16.msra.mxu0 %v2414
    %2591 = vmatpush.bf16.msra.mxu0 %v2412
    %2592 = vmatpush.bf16.msra.mxu0 %v2410
    %2593 = vmatpush.bf16.msra.mxu0 %v2408
    %2594 = vmatpush.bf16.msra.mxu0 %v2406
    %2595 = vmatmul.bf16.gmra.mxu0 %v2124
    %v2596 = vpop.f32.mrf.mxu0
    %v2597 = vadd.f32 %v2583, %v2596
    %v2598 = vpop.f32.mrf.mxu0
    %v2599 = vadd.f32 %v2585, %v2598
    %2600 = vdwg.mxu0
    %2601 = vmatpush.bf16.msra.mxu0 %v2436
    %2602 = vmatpush.bf16.msra.mxu0 %v2434
    %2603 = vmatpush.bf16.msra.mxu0 %v2432
    %2604 = vmatpush.bf16.msra.mxu0 %v2430
    %2605 = vmatpush.bf16.msra.mxu0 %v2428
    %2606 = vmatpush.bf16.msra.mxu0 %v2426
    %2607 = vmatpush.bf16.msra.mxu0 %v2424
    %2608 = vmatpush.bf16.msra.mxu0 %v2422
    %2609 = vmatmul.bf16.gmra.mxu0 %v2125
    %v2610 = vpop.f32.mrf.mxu0
    %v2611 = vadd.f32 %v2597, %v2610
    %v2612 = vpop.f32.mrf.mxu0
    %v2613 = vadd.f32 %v2599, %v2612
    %2614 = vdwg.mxu0
    %2615 = vmatpush.bf16.msra.mxu0 %v2452
    %2616 = vmatpush.bf16.msra.mxu0 %v2450
    %2617 = vmatpush.bf16.msra.mxu0 %v2448
    %2618 = vmatpush.bf16.msra.mxu0 %v2446
    %2619 = vmatpush.bf16.msra.mxu0 %v2444
    %2620 = vmatpush.bf16.msra.mxu0 %v2442
    %2621 = vmatpush.bf16.msra.mxu0 %v2440
    %2622 = vmatpush.bf16.msra.mxu0 %v2438
    %2623 = vmatmul.bf16.gmra.mxu0 %v2126
    %v2624 = vpop.f32.mrf.mxu0
    %v2625 = vadd.f32 %v2611, %v2624
    %v2626 = vpop.f32.mrf.mxu0
    %v2627 = vadd.f32 %v2613, %v2626
    %2628 = vdwg.mxu0
    %v2629 = vmax.f32 %v2569, 0.0
    %v2630 = vmax.f32 %v2625, 0.0
    %v2631 = vmax.f32 %v2571, 0.0
    %v2632 = vmax.f32 %v2627, 0.0
    %v2633 = vpack.c.bf16 %v2631, %v2629
    %v2634 = vpack.c.bf16 %v2632, %v2630
    %v2635 = vld [vmem:[#allocation6] sm:$0xf]
    %v2636 = vld [vmem:[#allocation6 + $0x4] sm:$0xf]
    %v2637 = vld [vmem:[#allocation6 + $0x8] sm:$0xf]
    %v2638 = vld [vmem:[#allocation6 + $0xc] sm:$0xf]
    %v2639 = vld [vmem:[#allocation6 + $0x10] sm:$0xf]
    %v2640 = vld [vmem:[#allocation6 + $0x14] sm:$0xf]
    %v2641 = vld [vmem:[#allocation6 + $0x18] sm:$0xf]
    %v2642 = vld [vmem:[#allocation6 + $0x1c] sm:$0xf]
    %v2643 = vld [vmem:[#allocation6 + $0x20] sm:$0xf]
    %v2644 = vld [vmem:[#allocation6 + $0x24] sm:$0xf]
    %v2645 = vld [vmem:[#allocation6 + $0x28] sm:$0xf]
    %v2646 = vld [vmem:[#allocation6 + $0x2c] sm:$0xf]
    %v2647 = vld [vmem:[#allocation6 + $0x30] sm:$0xf]
    %v2648 = vld [vmem:[#allocation6 + $0x34] sm:$0xf]
    %v2649 = vld [vmem:[#allocation6 + $0x38] sm:$0xf]
    %v2650 = vld [vmem:[#allocation6 + $0x3c] sm:$0xf]
    %v2651 = vld [vmem:[#allocation6 + $0x40] sm:$0xf]
    %v2652 = vld [vmem:[#allocation6 + $0x44] sm:$0xf]
    %v2653 = vld [vmem:[#allocation6 + $0x48] sm:$0xf]
    %v2654 = vld [vmem:[#allocation6 + $0x4c] sm:$0xf]
    %v2655 = vld [vmem:[#allocation6 + $0x50] sm:$0xf]
    %v2656 = vld [vmem:[#allocation6 + $0x54] sm:$0xf]
    %v2657 = vld [vmem:[#allocation6 + $0x58] sm:$0xf]
    %v2658 = vld [vmem:[#allocation6 + $0x5c] sm:$0xf]
    %v2659 = vld [vmem:[#allocation6 + $0x60] sm:$0xf]
    %v2660 = vld [vmem:[#allocation6 + $0x64] sm:$0xf]
    %v2661 = vld [vmem:[#allocation6 + $0x68] sm:$0xf]
    %v2662 = vld [vmem:[#allocation6 + $0x6c] sm:$0xf]
    %v2663 = vld [vmem:[#allocation6 + $0x70] sm:$0xf]
    %v2664 = vld [vmem:[#allocation6 + $0x74] sm:$0xf]
    %v2665 = vld [vmem:[#allocation6 + $0x78] sm:$0xf]
    %v2666 = vld [vmem:[#allocation6 + $0x7c] sm:$0xf]
    %v2667 = vld [vmem:[%s6] sm:$0x1]
    %v2669 = vperm.slane %v2667, 0
    %v2703 = vunpack.c.l.b16 %v2635
    %v2704 = vunpack.c.l.b16 %v2636
    %v2705 = vunpack.c.l.b16 %v2637
    %v2706 = vunpack.c.l.b16 %v2638
    %v2707 = vunpack.c.l.b16 %v2639
    %v2708 = vunpack.c.l.b16 %v2640
    %v2709 = vunpack.c.l.b16 %v2641
    %v2710 = vunpack.c.l.b16 %v2642
    %v2711 = vunpack.c.l.b16 %v2643
    %v2712 = vunpack.c.l.b16 %v2644
    %v2713 = vunpack.c.l.b16 %v2645
    %v2714 = vunpack.c.l.b16 %v2646
    %v2715 = vunpack.c.l.b16 %v2647
    %v2716 = vunpack.c.l.b16 %v2648
    %v2717 = vunpack.c.l.b16 %v2649
    %v2718 = vunpack.c.l.b16 %v2650
    %v2719 = vunpack.c.l.b16 %v2651
    %v2720 = vunpack.c.l.b16 %v2652
    %v2721 = vunpack.c.l.b16 %v2653
    %v2722 = vunpack.c.l.b16 %v2654
    %v2723 = vunpack.c.l.b16 %v2655
    %v2724 = vunpack.c.l.b16 %v2656
    %v2725 = vunpack.c.l.b16 %v2657
    %v2726 = vunpack.c.l.b16 %v2658
    %v2727 = vunpack.c.l.b16 %v2659
    %v2728 = vunpack.c.l.b16 %v2660
    %v2729 = vunpack.c.l.b16 %v2661
    %v2730 = vunpack.c.l.b16 %v2662
    %v2731 = vunpack.c.l.b16 %v2663
    %v2732 = vunpack.c.l.b16 %v2664
    %v2733 = vunpack.c.l.b16 %v2665
    %v2734 = vunpack.c.l.b16 %v2666
    %v2735 = vpack.c.b16 %v2704, %v2703
    %v2736 = vpack.c.b16 %v2706, %v2705
    %v2737 = vpack.c.b16 %v2708, %v2707
    %v2738 = vpack.c.b16 %v2710, %v2709
    %v2739 = vpack.c.b16 %v2712, %v2711
    %v2740 = vpack.c.b16 %v2714, %v2713
    %v2741 = vpack.c.b16 %v2716, %v2715
    %v2742 = vpack.c.b16 %v2718, %v2717
    %v2743 = vpack.c.b16 %v2720, %v2719
    %v2744 = vpack.c.b16 %v2722, %v2721
    %v2745 = vpack.c.b16 %v2724, %v2723
    %v2746 = vpack.c.b16 %v2726, %v2725
    %v2747 = vpack.c.b16 %v2728, %v2727
    %v2748 = vpack.c.b16 %v2730, %v2729
    %v2749 = vpack.c.b16 %v2732, %v2731
    %v2750 = vpack.c.b16 %v2734, %v2733
    %2767 = vmatpush.bf16.msra.mxu0 %v2742
    %2768 = vmatpush.bf16.msra.mxu0 %v2741
    %2769 = vmatpush.bf16.msra.mxu0 %v2740
    %2770 = vmatpush.bf16.msra.mxu0 %v2739
    %2771 = vmatpush.bf16.msra.mxu0 %v2738
    %2772 = vmatpush.bf16.msra.mxu0 %v2737
    %2773 = vmatpush.bf16.msra.mxu0 %v2736
    %2774 = vmatpush.bf16.msra.mxu0 %v2735
    %2775 = vmatmul.bf16.gmra.mxu0 %v2633
    %v2776 = vpop.f32.mrf.mxu0
    %v2777 = vadd.f32 %v2669, %v2776
    %v2778 = vpop.f32.mrf.mxu0
    %v2779 = vadd.f32 %v2669, %v2778
    %2780 = vdwg.mxu0
    %2781 = vmatpush.bf16.msra.mxu0 %v2750
    %2782 = vmatpush.bf16.msra.mxu0 %v2749
    %2783 = vmatpush.bf16.msra.mxu0 %v2748
    %2784 = vmatpush.bf16.msra.mxu0 %v2747
    %2785 = vmatpush.bf16.msra.mxu0 %v2746
    %2786 = vmatpush.bf16.msra.mxu0 %v2745
    %2787 = vmatpush.bf16.msra.mxu0 %v2744
    %2788 = vmatpush.bf16.msra.mxu0 %v2743
    %2789 = vmatmul.bf16.gmra.mxu0 %v2634
    %v2790 = vpop.f32.mrf.mxu0
    %v2791 = vadd.f32 %v2777, %v2790
    %v2792 = vpop.f32.mrf.mxu0
    %v2793 = vadd.f32 %v2779, %v2792
    %2794 = vdwg.mxu0
    %2795 = vst [vmem:[%s7] sm:$0xff] %v2791
    %2796 = vst [vmem:[%s7 + $0x8] sm:$0xff] %v2793
    // Predicated region
    $region42: #{pointnet_cls2_forward.1} parent=1 // pred_check
      _
    $region43: #{pointnet_cls2_forward.1} parent=1 // pred_check_branch
      %2798 = sbr.rel (0) target = $region45
    $region44: #{pointnet_cls2_forward.1} parent=1 // pred_region
      _
    $region45: #{pointnet_cls2_forward.1} parent=1 // pred_fallthru
      _
    // Predicated region
    $region46: #{pointnet_cls2_forward.1} parent=1 // pred_check
      _
    $region47: #{pointnet_cls2_forward.1} parent=1 // pred_check_branch
      %2800 = sbr.rel (0) target = $region49
    $region48: #{pointnet_cls2_forward.1} parent=1 // pred_region
      _
    $region49: #{pointnet_cls2_forward.1} parent=1 // pred_fallthru
      _
    %2801 = vsyncpa [#allocation3], 1
    %2802 = vsyncpa [#allocation5], 1

</llo_original>
